<compile_context>
chip_gen: v6e
topology: v6e:2x2x1
jax: 0.10.0
libtpu: 0.0.40
codegen_flags: <defaults>
</compile_context>

<pallas_src>
from functools import partial

import jax
import jax.numpy as jnp
from jax import lax
from jax.experimental import pallas as pl
from jax.experimental.pallas import tpu as pltpu

T, B = 8, 2            # seq len, batch
D_IN = 16              # feature dim of `data`
D_LATENT = 32          # encoder.dim_latent
D_HIDDEN = 32          # decoder.dim_hidden
D_OUT = 16             # decoder output feature dim


# --------------------------- fused forward kernel ---------------------------
def fused_encdec_kernel(x2_ref, len_ref, gw_ref, mw_ref, bias_ref,
                        out_ref, h_all):
    H = D_HIDDEN
    lens = len_ref[...]                                    # (B, 1) int32
    x2 = x2_ref[...]                                       # (T*B, D_IN) time-major

    # -------- unpack packed parameter slabs (static slices, zero-cost) --------
    w_enc = mw_ref[0:D_IN, 0:D_LATENT]                     # (16, 32)
    w_br = mw_ref[D_IN:D_IN + D_LATENT, 0:2 * H]           # (32, 64)
    wo_aug = mw_ref[D_IN + D_LATENT:D_IN + D_LATENT + H + 1, 0:D_OUT]   # (33, 16)
    wxd = gw_ref[0:D_IN, :]                                # (16, 4H)
    wxz = gw_ref[D_IN:D_IN + D_LATENT, :]                  # (32, 4H)
    wh = gw_ref[D_IN + D_LATENT:D_IN + D_LATENT + H, :]    # (32, 4H)
    b_enc = bias_ref[:, 0:D_LATENT]                        # (1, 32)
    b_br = bias_ref[:, 128:128 + 2 * H]                    # (1, 64)
    b_g = bias_ref[:, 256:256 + 4 * H]                     # (1, 128)

    # -------- encoder (synthetic): masked mean-pool (tree) -> linear -> tanh --------
    terms = [x2[t * B:(t + 1) * B, :] * (lens > t).astype(jnp.float32)
             for t in range(T)]                            # 8 independent masked terms
    while len(terms) > 1:                                  # depth-3 tree reduction
        terms = [terms[2 * i] + terms[2 * i + 1] for i in range(len(terms) // 2)]
    denom = jnp.maximum(jnp.minimum(lens.astype(jnp.float32), float(T)), 1.0)
    pooled = terms[0] / denom                              # (B, D_IN)
    z = jnp.tanh(jnp.dot(pooled, w_enc, preferred_element_type=jnp.float32) + b_enc)

    # -------- bridge: tanh(Linear(z)).split(dim_hidden) -> (h0, c0) --------
    s = jnp.tanh(jnp.dot(z, w_br, preferred_element_type=jnp.float32) + b_br)
    h = s[:, :H]                                           # (B, H)
    c = s[:, H:]                                           # (B, H)

    # -------- batched + loop-invariant gate contributions --------
    # cat([data, z_rep]) @ Wx == data @ Wx_d + z @ Wx_z  (z time-invariant)
    zg = jnp.dot(z, wxz, preferred_element_type=jnp.float32) + b_g      # (B, 4H)
    zg_all = jnp.concatenate([zg] * T, axis=0)                          # (T*B, 4H)
    xg_all = jnp.dot(x2, wxd, preferred_element_type=jnp.float32) + zg_all

    wh_bf = wh.astype(jnp.bfloat16)        # bf16 operands for the on-chain matmul

    # hoisted per-lane activation constants: sigmoid(x) = 0.5 + 0.5 * tanh(0.5 * x)
    lane = lax.broadcasted_iota(jnp.int32, (B, 4 * H), 1)
    is_g = (lane >= 2 * H) & (lane < 3 * H)                # tanh lanes (gate g)
    a_scale = jnp.where(is_g, 1.0, 0.5)
    a_alpha = jnp.where(is_g, 1.0, 0.5)
    a_beta = jnp.where(is_g, 0.0, 0.5)

    # hoisted validity masks (independent of the recurrence)
    valids = [lens > t for t in range(T)]                  # (B, 1) bool each
    valid_fs = [v.astype(jnp.float32) for v in valids]

    # fill the validity column of h_all once (column H), off the critical path
    h_all[:, H:H + 1] = jnp.concatenate(valid_fs, axis=0)  # (T*B, 1)

    # -------- unrolled LSTM recurrence (only h@Wh + 2 tanh stay on the chain) --------
    for t in range(T):
        gates = xg_all[t * B:(t + 1) * B, :] + jnp.dot(
            h.astype(jnp.bfloat16), wh_bf, preferred_element_type=jnp.float32)
        act = a_alpha * jnp.tanh(gates * a_scale) + a_beta  # single EUP tanh
        i = act[:, 0 * H:1 * H]
        f = act[:, 1 * H:2 * H]
        g = act[:, 2 * H:3 * H]
        o = act[:, 3 * H:4 * H]
        c_new = f * c + i * g
        h_new = o * jnp.tanh(c_new)
        h = jnp.where(valids[t], h_new, h)                 # freeze state past length
        c = jnp.where(valids[t], c_new, c)
        # store the *masked* (zeroed past length) hidden for the output projection
        h_all[t * B:(t + 1) * B, 0:H] = valid_fs[t] * h_new

    # -------- batched output projection: [h_all | valid] @ [wo ; bo] --------
    out_ref[...] = jnp.dot(h_all[...], wo_aug, preferred_element_type=jnp.float32)


# ------------------------------ forward (glue) ------------------------------
def encoder_decoder_forward(params, data, lengths):
    lengths2d = lengths.reshape(B, 1).astype(jnp.int32)
    data2d = data.reshape(T * B, D_IN)                     # time-major flatten (free)

    out2d = pl.pallas_call(
        fused_encdec_kernel,
        out_shape=jax.ShapeDtypeStruct((T * B, D_OUT), jnp.float32),
        scratch_shapes=[pltpu.VMEM((T * B, D_HIDDEN + 1), jnp.float32)],   # h_all (+valid col)
    )(data2d, lengths2d, params["gate_w"], params["misc_w"], params["bias"])

    return out2d.reshape(T, B, D_OUT)                      # free metadata reshape


def init_params(key):
    ks = jax.random.split(key, 10)
    s = 0.1
    w_enc = s * jax.random.normal(ks[0], (D_IN, D_LATENT), jnp.float32)
    b_enc = s * jax.random.normal(ks[1], (1, D_LATENT), jnp.float32)
    w_br = s * jax.random.normal(ks[2], (D_LATENT, 2 * D_HIDDEN), jnp.float32)
    b_br = s * jax.random.normal(ks[3], (1, 2 * D_HIDDEN), jnp.float32)
    wx_d = s * jax.random.normal(ks[4], (D_IN, 4 * D_HIDDEN), jnp.float32)
    wx_z = s * jax.random.normal(ks[5], (D_LATENT, 4 * D_HIDDEN), jnp.float32)
    wh = s * jax.random.normal(ks[6], (D_HIDDEN, 4 * D_HIDDEN), jnp.float32)
    b = s * jax.random.normal(ks[7], (1, 4 * D_HIDDEN), jnp.float32)
    wo = s * jax.random.normal(ks[8], (D_HIDDEN, D_OUT), jnp.float32)
    bo = s * jax.random.normal(ks[9], (1, D_OUT), jnp.float32)

    # ---- pack 12 tiny params into 3 slabs (done once, outside the hot path) ----
    def pad_to(a, rows, cols):
        return jnp.pad(a, ((0, rows - a.shape[0]), (0, cols - a.shape[1])))

    gate_w = jnp.concatenate([wx_d, wx_z, wh], axis=0)                       # (80, 128)
    wo_aug = jnp.concatenate([wo, bo], axis=0)                               # (33, 16)
    misc_w = jnp.concatenate([pad_to(w_enc, D_IN, 2 * D_HIDDEN),
                              pad_to(w_br, D_LATENT, 2 * D_HIDDEN),
                              pad_to(wo_aug, D_HIDDEN + 1, 2 * D_HIDDEN)],
                             axis=0)                                         # (81, 64)
    bias = jnp.concatenate([pad_to(b_enc, 1, 128),
                            pad_to(b_br, 1, 128),
                            b], axis=1)                                      # (1, 384)

    return {"gate_w": gate_w, "misc_w": misc_w, "bias": bias}


if __name__ == "__main__":
    key = jax.random.PRNGKey(0)
    k_param, k_data = jax.random.split(key)
    params = init_params(k_param)

    data = jax.random.normal(k_data, (T, B, D_IN), jnp.float32)   # (seq, batch, feat)
    lengths = jnp.array([8, 5], dtype=jnp.int32)                  # per-batch valid lengths

    out = jax.jit(partial(encoder_decoder_forward, params))(data, lengths)
    jax.block_until_ready(out)

    assert out.shape == (T, B, D_OUT) and out.dtype == jnp.float32
    assert bool(jnp.all(jnp.isfinite(out)))
    print("KERNEL_OK")
</pallas_src>

<mosaic_0001>
module attributes {stable_mosaic.version = 11 : i64} {
  func.func @fused_encdec_kernel(%arg0: memref<16x16xf32, #tpu.memory_space<vmem>>, %arg1: memref<2x1xi32, #tpu.memory_space<vmem>>, %arg2: memref<80x128xf32, #tpu.memory_space<vmem>>, %arg3: memref<81x64xf32, #tpu.memory_space<vmem>>, %arg4: memref<1x384xf32, #tpu.memory_space<vmem>>, %arg5: memref<16x16xf32, #tpu.memory_space<vmem>>, %arg6: memref<16x33xf32, #tpu.memory_space<vmem>>) attributes {dimension_semantics = [], scalar_prefetch = 0 : i64, scratch_operands = 1 : i64, tpu.core_type = #tpu.core_type<tc>} {
    %c0 = arith.constant 0 : index
    %c0_0 = arith.constant 0 : index
    %0 = vector.load %arg1[%c0, %c0_0] : memref<2x1xi32, #tpu.memory_space<vmem>>, vector<2x1xi32>
    %c0_1 = arith.constant 0 : index
    %c0_2 = arith.constant 0 : index
    %1 = vector.load %arg0[%c0_1, %c0_2] : memref<16x16xf32, #tpu.memory_space<vmem>>, vector<16x16xf32>
    %c0_3 = arith.constant 0 : index
    %c0_4 = arith.constant 0 : index
    %2 = vector.load %arg3[%c0_3, %c0_4] : memref<81x64xf32, #tpu.memory_space<vmem>>, vector<16x32xf32>
    %c16 = arith.constant 16 : index
    %c0_5 = arith.constant 0 : index
    %3 = vector.load %arg3[%c16, %c0_5] : memref<81x64xf32, #tpu.memory_space<vmem>>, vector<32x64xf32>
    %c48 = arith.constant 48 : index
    %c0_6 = arith.constant 0 : index
    %4 = vector.load %arg3[%c48, %c0_6] : memref<81x64xf32, #tpu.memory_space<vmem>>, vector<33x16xf32>
    %c0_7 = arith.constant 0 : index
    %c0_8 = arith.constant 0 : index
    %5 = vector.load %arg2[%c0_7, %c0_8] : memref<80x128xf32, #tpu.memory_space<vmem>>, vector<16x128xf32>
    %c16_9 = arith.constant 16 : index
    %c0_10 = arith.constant 0 : index
    %6 = vector.load %arg2[%c16_9, %c0_10] : memref<80x128xf32, #tpu.memory_space<vmem>>, vector<32x128xf32>
    %c48_11 = arith.constant 48 : index
    %c0_12 = arith.constant 0 : index
    %7 = vector.load %arg2[%c48_11, %c0_12] : memref<80x128xf32, #tpu.memory_space<vmem>>, vector<32x128xf32>
    %c0_13 = arith.constant 0 : index
    %c0_14 = arith.constant 0 : index
    %8 = vector.load %arg4[%c0_13, %c0_14] : memref<1x384xf32, #tpu.memory_space<vmem>>, vector<1x32xf32>
    %c0_15 = arith.constant 0 : index
    %c128 = arith.constant 128 : index
    %9 = vector.load %arg4[%c0_15, %c128] : memref<1x384xf32, #tpu.memory_space<vmem>>, vector<1x64xf32>
    %c0_16 = arith.constant 0 : index
    %c256 = arith.constant 256 : index
    %10 = vector.load %arg4[%c0_16, %c256] : memref<1x384xf32, #tpu.memory_space<vmem>>, vector<1x128xf32>
    %11 = vector.extract_strided_slice %1 {offsets = [0, 0], sizes = [2, 16], strides = [1, 1]} : vector<16x16xf32> to vector<2x16xf32>
    %c0_i32 = arith.constant 0 : i32
    %12 = vector.broadcast %c0_i32 : i32 to vector<2x1xi32>
    %13 = arith.cmpi sgt, %0, %12 : vector<2x1xi32>
    %14 = arith.extui %13 : vector<2x1xi1> to vector<2x1xi32>
    %15 = arith.sitofp %14 : vector<2x1xi32> to vector<2x1xf32>
    %16 = vector.broadcast %15 : vector<2x1xf32> to vector<2x16xf32>
    %17 = arith.mulf %11, %16 : vector<2x16xf32>
    %18 = vector.extract_strided_slice %1 {offsets = [2, 0], sizes = [2, 16], strides = [1, 1]} : vector<16x16xf32> to vector<2x16xf32>
    %c1_i32 = arith.constant 1 : i32
    %19 = vector.broadcast %c1_i32 : i32 to vector<2x1xi32>
    %20 = arith.cmpi sgt, %0, %19 : vector<2x1xi32>
    %21 = arith.extui %20 : vector<2x1xi1> to vector<2x1xi32>
    %22 = arith.sitofp %21 : vector<2x1xi32> to vector<2x1xf32>
    %23 = vector.broadcast %22 : vector<2x1xf32> to vector<2x16xf32>
    %24 = arith.mulf %18, %23 : vector<2x16xf32>
    %25 = vector.extract_strided_slice %1 {offsets = [4, 0], sizes = [2, 16], strides = [1, 1]} : vector<16x16xf32> to vector<2x16xf32>
    %c2_i32 = arith.constant 2 : i32
    %26 = vector.broadcast %c2_i32 : i32 to vector<2x1xi32>
    %27 = arith.cmpi sgt, %0, %26 : vector<2x1xi32>
    %28 = arith.extui %27 : vector<2x1xi1> to vector<2x1xi32>
    %29 = arith.sitofp %28 : vector<2x1xi32> to vector<2x1xf32>
    %30 = vector.broadcast %29 : vector<2x1xf32> to vector<2x16xf32>
    %31 = arith.mulf %25, %30 : vector<2x16xf32>
    %32 = vector.extract_strided_slice %1 {offsets = [6, 0], sizes = [2, 16], strides = [1, 1]} : vector<16x16xf32> to vector<2x16xf32>
    %c3_i32 = arith.constant 3 : i32
    %33 = vector.broadcast %c3_i32 : i32 to vector<2x1xi32>
    %34 = arith.cmpi sgt, %0, %33 : vector<2x1xi32>
    %35 = arith.extui %34 : vector<2x1xi1> to vector<2x1xi32>
    %36 = arith.sitofp %35 : vector<2x1xi32> to vector<2x1xf32>
    %37 = vector.broadcast %36 : vector<2x1xf32> to vector<2x16xf32>
    %38 = arith.mulf %32, %37 : vector<2x16xf32>
    %39 = vector.extract_strided_slice %1 {offsets = [8, 0], sizes = [2, 16], strides = [1, 1]} : vector<16x16xf32> to vector<2x16xf32>
    %c4_i32 = arith.constant 4 : i32
    %40 = vector.broadcast %c4_i32 : i32 to vector<2x1xi32>
    %41 = arith.cmpi sgt, %0, %40 : vector<2x1xi32>
    %42 = arith.extui %41 : vector<2x1xi1> to vector<2x1xi32>
    %43 = arith.sitofp %42 : vector<2x1xi32> to vector<2x1xf32>
    %44 = vector.broadcast %43 : vector<2x1xf32> to vector<2x16xf32>
    %45 = arith.mulf %39, %44 : vector<2x16xf32>
    %46 = vector.extract_strided_slice %1 {offsets = [10, 0], sizes = [2, 16], strides = [1, 1]} : vector<16x16xf32> to vector<2x16xf32>
    %c5_i32 = arith.constant 5 : i32
    %47 = vector.broadcast %c5_i32 : i32 to vector<2x1xi32>
    %48 = arith.cmpi sgt, %0, %47 : vector<2x1xi32>
    %49 = arith.extui %48 : vector<2x1xi1> to vector<2x1xi32>
    %50 = arith.sitofp %49 : vector<2x1xi32> to vector<2x1xf32>
    %51 = vector.broadcast %50 : vector<2x1xf32> to vector<2x16xf32>
    %52 = arith.mulf %46, %51 : vector<2x16xf32>
    %53 = vector.extract_strided_slice %1 {offsets = [12, 0], sizes = [2, 16], strides = [1, 1]} : vector<16x16xf32> to vector<2x16xf32>
    %c6_i32 = arith.constant 6 : i32
    %54 = vector.broadcast %c6_i32 : i32 to vector<2x1xi32>
    %55 = arith.cmpi sgt, %0, %54 : vector<2x1xi32>
    %56 = arith.extui %55 : vector<2x1xi1> to vector<2x1xi32>
    %57 = arith.sitofp %56 : vector<2x1xi32> to vector<2x1xf32>
    %58 = vector.broadcast %57 : vector<2x1xf32> to vector<2x16xf32>
    %59 = arith.mulf %53, %58 : vector<2x16xf32>
    %60 = vector.extract_strided_slice %1 {offsets = [14, 0], sizes = [2, 16], strides = [1, 1]} : vector<16x16xf32> to vector<2x16xf32>
    %c7_i32 = arith.constant 7 : i32
    %61 = vector.broadcast %c7_i32 : i32 to vector<2x1xi32>
    %62 = arith.cmpi sgt, %0, %61 : vector<2x1xi32>
    %63 = arith.extui %62 : vector<2x1xi1> to vector<2x1xi32>
    %64 = arith.sitofp %63 : vector<2x1xi32> to vector<2x1xf32>
    %65 = vector.broadcast %64 : vector<2x1xf32> to vector<2x16xf32>
    %66 = arith.mulf %60, %65 : vector<2x16xf32>
    %67 = arith.addf %17, %24 : vector<2x16xf32>
    %68 = arith.addf %31, %38 : vector<2x16xf32>
    %69 = arith.addf %45, %52 : vector<2x16xf32>
    %70 = arith.addf %59, %66 : vector<2x16xf32>
    %71 = arith.addf %67, %68 : vector<2x16xf32>
    %72 = arith.addf %69, %70 : vector<2x16xf32>
    %73 = arith.addf %71, %72 : vector<2x16xf32>
    %74 = arith.sitofp %0 : vector<2x1xi32> to vector<2x1xf32>
    %cst = arith.constant 8.000000e+00 : f32
    %75 = vector.broadcast %cst : f32 to vector<2x1xf32>
    %76 = arith.minimumf %74, %75 : vector<2x1xf32>
    %cst_17 = arith.constant 1.000000e+00 : f32
    %77 = vector.broadcast %cst_17 : f32 to vector<2x1xf32>
    %78 = arith.maximumf %76, %77 : vector<2x1xf32>
    %79 = vector.broadcast %78 : vector<2x1xf32> to vector<2x16xf32>
    %80 = arith.divf %73, %79 : vector<2x16xf32>
    %cst_18 = arith.constant dense<0.000000e+00> : vector<2x32xf32>
    %81 = tpu.matmul %80, %2, %cst_18 {dimension_numbers = #tpu.dot_dimension_numbers<[1], [0], [0], [1], [0, 0, 1, 1], [], []>} : vector<2x16xf32>, vector<16x32xf32>, vector<2x32xf32> -> vector<2x32xf32>
    %82 = vector.broadcast %8 : vector<1x32xf32> to vector<2x32xf32>
    %83 = arith.addf %81, %82 : vector<2x32xf32>
    %84 = math.tanh %83 : vector<2x32xf32>
    %cst_19 = arith.constant dense<0.000000e+00> : vector<2x64xf32>
    %85 = tpu.matmul %84, %3, %cst_19 {dimension_numbers = #tpu.dot_dimension_numbers<[1], [0], [0], [1], [0, 0, 1, 1], [], []>} : vector<2x32xf32>, vector<32x64xf32>, vector<2x64xf32> -> vector<2x64xf32>
    %86 = vector.broadcast %9 : vector<1x64xf32> to vector<2x64xf32>
    %87 = arith.addf %85, %86 : vector<2x64xf32>
    %88 = math.tanh %87 : vector<2x64xf32>
    %89 = vector.extract_strided_slice %88 {offsets = [0, 0], sizes = [2, 32], strides = [1, 1]} : vector<2x64xf32> to vector<2x32xf32>
    %90 = vector.extract_strided_slice %88 {offsets = [0, 32], sizes = [2, 32], strides = [1, 1]} : vector<2x64xf32> to vector<2x32xf32>
    %cst_20 = arith.constant dense<0.000000e+00> : vector<2x128xf32>
    %91 = tpu.matmul %84, %6, %cst_20 {dimension_numbers = #tpu.dot_dimension_numbers<[1], [0], [0], [1], [0, 0, 1, 1], [], []>} : vector<2x32xf32>, vector<32x128xf32>, vector<2x128xf32> -> vector<2x128xf32>
    %92 = vector.broadcast %10 : vector<1x128xf32> to vector<2x128xf32>
    %93 = arith.addf %91, %92 : vector<2x128xf32>
    %94 = tpu.concatenate %93, %93, %93, %93, %93, %93, %93, %93 in 0 : vector<2x128xf32>, vector<2x128xf32>, vector<2x128xf32>, vector<2x128xf32>, vector<2x128xf32>, vector<2x128xf32>, vector<2x128xf32>, vector<2x128xf32> -> vector<16x128xf32>
    %cst_21 = arith.constant dense<0.000000e+00> : vector<16x128xf32>
    %95 = tpu.matmul %1, %5, %cst_21 {dimension_numbers = #tpu.dot_dimension_numbers<[1], [0], [0], [1], [0, 0, 1, 1], [], []>} : vector<16x16xf32>, vector<16x128xf32>, vector<16x128xf32> -> vector<16x128xf32>
    %96 = arith.addf %95, %94 : vector<16x128xf32>
    %97 = arith.truncf %7 : vector<32x128xf32> to vector<32x128xbf16>
    %98 = tpu.iota {dimensions = array<i32: 1>} : vector<2x128xi32>
    %c64_i32 = arith.constant 64 : i32
    %99 = vector.broadcast %c64_i32 : i32 to vector<2x128xi32>
    %100 = arith.cmpi sge, %98, %99 : vector<2x128xi32>
    %c96_i32 = arith.constant 96 : i32
    %101 = vector.broadcast %c96_i32 : i32 to vector<2x128xi32>
    %102 = arith.cmpi slt, %98, %101 : vector<2x128xi32>
    %103 = arith.andi %100, %102 : vector<2x128xi1>
    %cst_22 = arith.constant 1.000000e+00 : f32
    %cst_23 = arith.constant 5.000000e-01 : f32
    %104 = vector.broadcast %cst_22 : f32 to vector<2x128xf32>
    %105 = vector.broadcast %cst_23 : f32 to vector<2x128xf32>
    %106 = arith.select %103, %104, %105 : vector<2x128xi1>, vector<2x128xf32>
    %cst_24 = arith.constant 1.000000e+00 : f32
    %cst_25 = arith.constant 5.000000e-01 : f32
    %107 = vector.broadcast %cst_24 : f32 to vector<2x128xf32>
    %108 = vector.broadcast %cst_25 : f32 to vector<2x128xf32>
    %109 = arith.select %103, %107, %108 : vector<2x128xi1>, vector<2x128xf32>
    %cst_26 = arith.constant 0.000000e+00 : f32
    %cst_27 = arith.constant 5.000000e-01 : f32
    %110 = vector.broadcast %cst_26 : f32 to vector<2x128xf32>
    %111 = vector.broadcast %cst_27 : f32 to vector<2x128xf32>
    %112 = arith.select %103, %110, %111 : vector<2x128xi1>, vector<2x128xf32>
    %c0_i32_28 = arith.constant 0 : i32
    %113 = vector.broadcast %c0_i32_28 : i32 to vector<2x1xi32>
    %114 = arith.cmpi sgt, %0, %113 : vector<2x1xi32>
    %c1_i32_29 = arith.constant 1 : i32
    %115 = vector.broadcast %c1_i32_29 : i32 to vector<2x1xi32>
    %116 = arith.cmpi sgt, %0, %115 : vector<2x1xi32>
    %c2_i32_30 = arith.constant 2 : i32
    %117 = vector.broadcast %c2_i32_30 : i32 to vector<2x1xi32>
    %118 = arith.cmpi sgt, %0, %117 : vector<2x1xi32>
    %c3_i32_31 = arith.constant 3 : i32
    %119 = vector.broadcast %c3_i32_31 : i32 to vector<2x1xi32>
    %120 = arith.cmpi sgt, %0, %119 : vector<2x1xi32>
    %c4_i32_32 = arith.constant 4 : i32
    %121 = vector.broadcast %c4_i32_32 : i32 to vector<2x1xi32>
    %122 = arith.cmpi sgt, %0, %121 : vector<2x1xi32>
    %c5_i32_33 = arith.constant 5 : i32
    %123 = vector.broadcast %c5_i32_33 : i32 to vector<2x1xi32>
    %124 = arith.cmpi sgt, %0, %123 : vector<2x1xi32>
    %c6_i32_34 = arith.constant 6 : i32
    %125 = vector.broadcast %c6_i32_34 : i32 to vector<2x1xi32>
    %126 = arith.cmpi sgt, %0, %125 : vector<2x1xi32>
    %c7_i32_35 = arith.constant 7 : i32
    %127 = vector.broadcast %c7_i32_35 : i32 to vector<2x1xi32>
    %128 = arith.cmpi sgt, %0, %127 : vector<2x1xi32>
    %129 = arith.extui %114 : vector<2x1xi1> to vector<2x1xi32>
    %130 = arith.sitofp %129 : vector<2x1xi32> to vector<2x1xf32>
    %131 = arith.extui %116 : vector<2x1xi1> to vector<2x1xi32>
    %132 = arith.sitofp %131 : vector<2x1xi32> to vector<2x1xf32>
    %133 = arith.extui %118 : vector<2x1xi1> to vector<2x1xi32>
    %134 = arith.sitofp %133 : vector<2x1xi32> to vector<2x1xf32>
    %135 = arith.extui %120 : vector<2x1xi1> to vector<2x1xi32>
    %136 = arith.sitofp %135 : vector<2x1xi32> to vector<2x1xf32>
    %137 = arith.extui %122 : vector<2x1xi1> to vector<2x1xi32>
    %138 = arith.sitofp %137 : vector<2x1xi32> to vector<2x1xf32>
    %139 = arith.extui %124 : vector<2x1xi1> to vector<2x1xi32>
    %140 = arith.sitofp %139 : vector<2x1xi32> to vector<2x1xf32>
    %141 = arith.extui %126 : vector<2x1xi1> to vector<2x1xi32>
    %142 = arith.sitofp %141 : vector<2x1xi32> to vector<2x1xf32>
    %143 = arith.extui %128 : vector<2x1xi1> to vector<2x1xi32>
    %144 = arith.sitofp %143 : vector<2x1xi32> to vector<2x1xf32>
    %145 = tpu.concatenate %130, %132, %134, %136, %138, %140, %142, %144 in 0 : vector<2x1xf32>, vector<2x1xf32>, vector<2x1xf32>, vector<2x1xf32>, vector<2x1xf32>, vector<2x1xf32>, vector<2x1xf32>, vector<2x1xf32> -> vector<16x1xf32>
    %c0_36 = arith.constant 0 : index
    %c32 = arith.constant 32 : index
    %146 = vector.load %arg6[%c0_36, %c32] : memref<16x33xf32, #tpu.memory_space<vmem>>, vector<16x1xf32>
    tpu.vector_store %arg6[%c0_36, %c32], %145 {strides = array<i32>} : memref<16x33xf32, #tpu.memory_space<vmem>>, vector<16x1xf32>,
    %147 = vector.extract_strided_slice %96 {offsets = [0, 0], sizes = [2, 128], strides = [1, 1]} : vector<16x128xf32> to vector<2x128xf32>
    %148 = arith.truncf %89 : vector<2x32xf32> to vector<2x32xbf16>
    %cst_37 = arith.constant dense<0.000000e+00> : vector<2x128xf32>
    %149 = tpu.matmul %148, %97, %cst_37 {dimension_numbers = #tpu.dot_dimension_numbers<[1], [0], [0], [1], [0, 0, 1, 1], [], []>} : vector<2x32xbf16>, vector<32x128xbf16>, vector<2x128xf32> -> vector<2x128xf32>
    %150 = arith.addf %147, %149 : vector<2x128xf32>
    %151 = arith.mulf %150, %106 : vector<2x128xf32>
    %152 = math.tanh %151 : vector<2x128xf32>
    %153 = arith.mulf %109, %152 : vector<2x128xf32>
    %154 = arith.addf %153, %112 : vector<2x128xf32>
    %155 = vector.extract_strided_slice %154 {offsets = [0, 0], sizes = [2, 32], strides = [1, 1]} : vector<2x128xf32> to vector<2x32xf32>
    %156 = vector.extract_strided_slice %154 {offsets = [0, 32], sizes = [2, 32], strides = [1, 1]} : vector<2x128xf32> to vector<2x32xf32>
    %157 = vector.extract_strided_slice %154 {offsets = [0, 64], sizes = [2, 32], strides = [1, 1]} : vector<2x128xf32> to vector<2x32xf32>
    %158 = vector.extract_strided_slice %154 {offsets = [0, 96], sizes = [2, 32], strides = [1, 1]} : vector<2x128xf32> to vector<2x32xf32>
    %159 = arith.mulf %156, %90 : vector<2x32xf32>
    %160 = arith.mulf %155, %157 : vector<2x32xf32>
    %161 = arith.addf %159, %160 : vector<2x32xf32>
    %162 = math.tanh %161 : vector<2x32xf32>
    %163 = arith.mulf %158, %162 : vector<2x32xf32>
    %164 = vector.shape_cast %114 : vector<2x1xi1> to vector<2x1xi1>
    %165 = vector.broadcast %164 : vector<2x1xi1> to vector<2x32xi1>
    %166 = arith.select %165, %163, %89 : vector<2x32xi1>, vector<2x32xf32>
    %167 = vector.shape_cast %114 : vector<2x1xi1> to vector<2x1xi1>
    %168 = vector.broadcast %167 : vector<2x1xi1> to vector<2x32xi1>
    %169 = arith.select %168, %161, %90 : vector<2x32xi1>, vector<2x32xf32>
    %170 = vector.broadcast %130 : vector<2x1xf32> to vector<2x32xf32>
    %171 = arith.mulf %170, %163 : vector<2x32xf32>
    %c0_38 = arith.constant 0 : index
    %c0_39 = arith.constant 0 : index
    %172 = vector.load %arg6[%c0_38, %c0_39] : memref<16x33xf32, #tpu.memory_space<vmem>>, vector<2x32xf32>
    tpu.vector_store %arg6[%c0_38, %c0_39], %171 {strides = array<i32>} : memref<16x33xf32, #tpu.memory_space<vmem>>, vector<2x32xf32>,
    %173 = vector.extract_strided_slice %96 {offsets = [2, 0], sizes = [2, 128], strides = [1, 1]} : vector<16x128xf32> to vector<2x128xf32>
    %174 = arith.truncf %166 : vector<2x32xf32> to vector<2x32xbf16>
    %cst_40 = arith.constant dense<0.000000e+00> : vector<2x128xf32>
    %175 = tpu.matmul %174, %97, %cst_40 {dimension_numbers = #tpu.dot_dimension_numbers<[1], [0], [0], [1], [0, 0, 1, 1], [], []>} : vector<2x32xbf16>, vector<32x128xbf16>, vector<2x128xf32> -> vector<2x128xf32>
    %176 = arith.addf %173, %175 : vector<2x128xf32>
    %177 = arith.mulf %176, %106 : vector<2x128xf32>
    %178 = math.tanh %177 : vector<2x128xf32>
    %179 = arith.mulf %109, %178 : vector<2x128xf32>
    %180 = arith.addf %179, %112 : vector<2x128xf32>
    %181 = vector.extract_strided_slice %180 {offsets = [0, 0], sizes = [2, 32], strides = [1, 1]} : vector<2x128xf32> to vector<2x32xf32>
    %182 = vector.extract_strided_slice %180 {offsets = [0, 32], sizes = [2, 32], strides = [1, 1]} : vector<2x128xf32> to vector<2x32xf32>
    %183 = vector.extract_strided_slice %180 {offsets = [0, 64], sizes = [2, 32], strides = [1, 1]} : vector<2x128xf32> to vector<2x32xf32>
    %184 = vector.extract_strided_slice %180 {offsets = [0, 96], sizes = [2, 32], strides = [1, 1]} : vector<2x128xf32> to vector<2x32xf32>
    %185 = arith.mulf %182, %169 : vector<2x32xf32>
    %186 = arith.mulf %181, %183 : vector<2x32xf32>
    %187 = arith.addf %185, %186 : vector<2x32xf32>
    %188 = math.tanh %187 : vector<2x32xf32>
    %189 = arith.mulf %184, %188 : vector<2x32xf32>
    %190 = vector.shape_cast %116 : vector<2x1xi1> to vector<2x1xi1>
    %191 = vector.broadcast %190 : vector<2x1xi1> to vector<2x32xi1>
    %192 = arith.select %191, %189, %166 : vector<2x32xi1>, vector<2x32xf32>
    %193 = vector.shape_cast %116 : vector<2x1xi1> to vector<2x1xi1>
    %194 = vector.broadcast %193 : vector<2x1xi1> to vector<2x32xi1>
    %195 = arith.select %194, %187, %169 : vector<2x32xi1>, vector<2x32xf32>
    %196 = vector.broadcast %132 : vector<2x1xf32> to vector<2x32xf32>
    %197 = arith.mulf %196, %189 : vector<2x32xf32>
    %c2 = arith.constant 2 : index
    %c0_41 = arith.constant 0 : index
    %198 = vector.load %arg6[%c2, %c0_41] : memref<16x33xf32, #tpu.memory_space<vmem>>, vector<2x32xf32>
    tpu.vector_store %arg6[%c2, %c0_41], %197 {strides = array<i32>} : memref<16x33xf32, #tpu.memory_space<vmem>>, vector<2x32xf32>,
    %199 = vector.extract_strided_slice %96 {offsets = [4, 0], sizes = [2, 128], strides = [1, 1]} : vector<16x128xf32> to vector<2x128xf32>
    %200 = arith.truncf %192 : vector<2x32xf32> to vector<2x32xbf16>
    %cst_42 = arith.constant dense<0.000000e+00> : vector<2x128xf32>
    %201 = tpu.matmul %200, %97, %cst_42 {dimension_numbers = #tpu.dot_dimension_numbers<[1], [0], [0], [1], [0, 0, 1, 1], [], []>} : vector<2x32xbf16>, vector<32x128xbf16>, vector<2x128xf32> -> vector<2x128xf32>
    %202 = arith.addf %199, %201 : vector<2x128xf32>
    %203 = arith.mulf %202, %106 : vector<2x128xf32>
    %204 = math.tanh %203 : vector<2x128xf32>
    %205 = arith.mulf %109, %204 : vector<2x128xf32>
    %206 = arith.addf %205, %112 : vector<2x128xf32>
    %207 = vector.extract_strided_slice %206 {offsets = [0, 0], sizes = [2, 32], strides = [1, 1]} : vector<2x128xf32> to vector<2x32xf32>
    %208 = vector.extract_strided_slice %206 {offsets = [0, 32], sizes = [2, 32], strides = [1, 1]} : vector<2x128xf32> to vector<2x32xf32>
    %209 = vector.extract_strided_slice %206 {offsets = [0, 64], sizes = [2, 32], strides = [1, 1]} : vector<2x128xf32> to vector<2x32xf32>
    %210 = vector.extract_strided_slice %206 {offsets = [0, 96], sizes = [2, 32], strides = [1, 1]} : vector<2x128xf32> to vector<2x32xf32>
    %211 = arith.mulf %208, %195 : vector<2x32xf32>
    %212 = arith.mulf %207, %209 : vector<2x32xf32>
    %213 = arith.addf %211, %212 : vector<2x32xf32>
    %214 = math.tanh %213 : vector<2x32xf32>
    %215 = arith.mulf %210, %214 : vector<2x32xf32>
    %216 = vector.shape_cast %118 : vector<2x1xi1> to vector<2x1xi1>
    %217 = vector.broadcast %216 : vector<2x1xi1> to vector<2x32xi1>
    %218 = arith.select %217, %215, %192 : vector<2x32xi1>, vector<2x32xf32>
    %219 = vector.shape_cast %118 : vector<2x1xi1> to vector<2x1xi1>
    %220 = vector.broadcast %219 : vector<2x1xi1> to vector<2x32xi1>
    %221 = arith.select %220, %213, %195 : vector<2x32xi1>, vector<2x32xf32>
    %222 = vector.broadcast %134 : vector<2x1xf32> to vector<2x32xf32>
    %223 = arith.mulf %222, %215 : vector<2x32xf32>
    %c4 = arith.constant 4 : index
    %c0_43 = arith.constant 0 : index
    %224 = vector.load %arg6[%c4, %c0_43] : memref<16x33xf32, #tpu.memory_space<vmem>>, vector<2x32xf32>
    tpu.vector_store %arg6[%c4, %c0_43], %223 {strides = array<i32>} : memref<16x33xf32, #tpu.memory_space<vmem>>, vector<2x32xf32>,
    %225 = vector.extract_strided_slice %96 {offsets = [6, 0], sizes = [2, 128], strides = [1, 1]} : vector<16x128xf32> to vector<2x128xf32>
    %226 = arith.truncf %218 : vector<2x32xf32> to vector<2x32xbf16>
    %cst_44 = arith.constant dense<0.000000e+00> : vector<2x128xf32>
    %227 = tpu.matmul %226, %97, %cst_44 {dimension_numbers = #tpu.dot_dimension_numbers<[1], [0], [0], [1], [0, 0, 1, 1], [], []>} : vector<2x32xbf16>, vector<32x128xbf16>, vector<2x128xf32> -> vector<2x128xf32>
    %228 = arith.addf %225, %227 : vector<2x128xf32>
    %229 = arith.mulf %228, %106 : vector<2x128xf32>
    %230 = math.tanh %229 : vector<2x128xf32>
    %231 = arith.mulf %109, %230 : vector<2x128xf32>
    %232 = arith.addf %231, %112 : vector<2x128xf32>
    %233 = vector.extract_strided_slice %232 {offsets = [0, 0], sizes = [2, 32], strides = [1, 1]} : vector<2x128xf32> to vector<2x32xf32>
    %234 = vector.extract_strided_slice %232 {offsets = [0, 32], sizes = [2, 32], strides = [1, 1]} : vector<2x128xf32> to vector<2x32xf32>
    %235 = vector.extract_strided_slice %232 {offsets = [0, 64], sizes = [2, 32], strides = [1, 1]} : vector<2x128xf32> to vector<2x32xf32>
    %236 = vector.extract_strided_slice %232 {offsets = [0, 96], sizes = [2, 32], strides = [1, 1]} : vector<2x128xf32> to vector<2x32xf32>
    %237 = arith.mulf %234, %221 : vector<2x32xf32>
    %238 = arith.mulf %233, %235 : vector<2x32xf32>
    %239 = arith.addf %237, %238 : vector<2x32xf32>
    %240 = math.tanh %239 : vector<2x32xf32>
    %241 = arith.mulf %236, %240 : vector<2x32xf32>
    %242 = vector.shape_cast %120 : vector<2x1xi1> to vector<2x1xi1>
    %243 = vector.broadcast %242 : vector<2x1xi1> to vector<2x32xi1>
    %244 = arith.select %243, %241, %218 : vector<2x32xi1>, vector<2x32xf32>
    %245 = vector.shape_cast %120 : vector<2x1xi1> to vector<2x1xi1>
    %246 = vector.broadcast %245 : vector<2x1xi1> to vector<2x32xi1>
    %247 = arith.select %246, %239, %221 : vector<2x32xi1>, vector<2x32xf32>
    %248 = vector.broadcast %136 : vector<2x1xf32> to vector<2x32xf32>
    %249 = arith.mulf %248, %241 : vector<2x32xf32>
    %c6 = arith.constant 6 : index
    %c0_45 = arith.constant 0 : index
    %250 = vector.load %arg6[%c6, %c0_45] : memref<16x33xf32, #tpu.memory_space<vmem>>, vector<2x32xf32>
    tpu.vector_store %arg6[%c6, %c0_45], %249 {strides = array<i32>} : memref<16x33xf32, #tpu.memory_space<vmem>>, vector<2x32xf32>,
    %251 = vector.extract_strided_slice %96 {offsets = [8, 0], sizes = [2, 128], strides = [1, 1]} : vector<16x128xf32> to vector<2x128xf32>
    %252 = arith.truncf %244 : vector<2x32xf32> to vector<2x32xbf16>
    %cst_46 = arith.constant dense<0.000000e+00> : vector<2x128xf32>
    %253 = tpu.matmul %252, %97, %cst_46 {dimension_numbers = #tpu.dot_dimension_numbers<[1], [0], [0], [1], [0, 0, 1, 1], [], []>} : vector<2x32xbf16>, vector<32x128xbf16>, vector<2x128xf32> -> vector<2x128xf32>
    %254 = arith.addf %251, %253 : vector<2x128xf32>
    %255 = arith.mulf %254, %106 : vector<2x128xf32>
    %256 = math.tanh %255 : vector<2x128xf32>
    %257 = arith.mulf %109, %256 : vector<2x128xf32>
    %258 = arith.addf %257, %112 : vector<2x128xf32>
    %259 = vector.extract_strided_slice %258 {offsets = [0, 0], sizes = [2, 32], strides = [1, 1]} : vector<2x128xf32> to vector<2x32xf32>
    %260 = vector.extract_strided_slice %258 {offsets = [0, 32], sizes = [2, 32], strides = [1, 1]} : vector<2x128xf32> to vector<2x32xf32>
    %261 = vector.extract_strided_slice %258 {offsets = [0, 64], sizes = [2, 32], strides = [1, 1]} : vector<2x128xf32> to vector<2x32xf32>
    %262 = vector.extract_strided_slice %258 {offsets = [0, 96], sizes = [2, 32], strides = [1, 1]} : vector<2x128xf32> to vector<2x32xf32>
    %263 = arith.mulf %260, %247 : vector<2x32xf32>
    %264 = arith.mulf %259, %261 : vector<2x32xf32>
    %265 = arith.addf %263, %264 : vector<2x32xf32>
    %266 = math.tanh %265 : vector<2x32xf32>
    %267 = arith.mulf %262, %266 : vector<2x32xf32>
    %268 = vector.shape_cast %122 : vector<2x1xi1> to vector<2x1xi1>
    %269 = vector.broadcast %268 : vector<2x1xi1> to vector<2x32xi1>
    %270 = arith.select %269, %267, %244 : vector<2x32xi1>, vector<2x32xf32>
    %271 = vector.shape_cast %122 : vector<2x1xi1> to vector<2x1xi1>
    %272 = vector.broadcast %271 : vector<2x1xi1> to vector<2x32xi1>
    %273 = arith.select %272, %265, %247 : vector<2x32xi1>, vector<2x32xf32>
    %274 = vector.broadcast %138 : vector<2x1xf32> to vector<2x32xf32>
    %275 = arith.mulf %274, %267 : vector<2x32xf32>
    %c8 = arith.constant 8 : index
    %c0_47 = arith.constant 0 : index
    %276 = vector.load %arg6[%c8, %c0_47] : memref<16x33xf32, #tpu.memory_space<vmem>>, vector<2x32xf32>
    tpu.vector_store %arg6[%c8, %c0_47], %275 {strides = array<i32>} : memref<16x33xf32, #tpu.memory_space<vmem>>, vector<2x32xf32>,
    %277 = vector.extract_strided_slice %96 {offsets = [10, 0], sizes = [2, 128], strides = [1, 1]} : vector<16x128xf32> to vector<2x128xf32>
    %278 = arith.truncf %270 : vector<2x32xf32> to vector<2x32xbf16>
    %cst_48 = arith.constant dense<0.000000e+00> : vector<2x128xf32>
    %279 = tpu.matmul %278, %97, %cst_48 {dimension_numbers = #tpu.dot_dimension_numbers<[1], [0], [0], [1], [0, 0, 1, 1], [], []>} : vector<2x32xbf16>, vector<32x128xbf16>, vector<2x128xf32> -> vector<2x128xf32>
    %280 = arith.addf %277, %279 : vector<2x128xf32>
    %281 = arith.mulf %280, %106 : vector<2x128xf32>
    %282 = math.tanh %281 : vector<2x128xf32>
    %283 = arith.mulf %109, %282 : vector<2x128xf32>
    %284 = arith.addf %283, %112 : vector<2x128xf32>
    %285 = vector.extract_strided_slice %284 {offsets = [0, 0], sizes = [2, 32], strides = [1, 1]} : vector<2x128xf32> to vector<2x32xf32>
    %286 = vector.extract_strided_slice %284 {offsets = [0, 32], sizes = [2, 32], strides = [1, 1]} : vector<2x128xf32> to vector<2x32xf32>
    %287 = vector.extract_strided_slice %284 {offsets = [0, 64], sizes = [2, 32], strides = [1, 1]} : vector<2x128xf32> to vector<2x32xf32>
    %288 = vector.extract_strided_slice %284 {offsets = [0, 96], sizes = [2, 32], strides = [1, 1]} : vector<2x128xf32> to vector<2x32xf32>
    %289 = arith.mulf %286, %273 : vector<2x32xf32>
    %290 = arith.mulf %285, %287 : vector<2x32xf32>
    %291 = arith.addf %289, %290 : vector<2x32xf32>
    %292 = math.tanh %291 : vector<2x32xf32>
    %293 = arith.mulf %288, %292 : vector<2x32xf32>
    %294 = vector.shape_cast %124 : vector<2x1xi1> to vector<2x1xi1>
    %295 = vector.broadcast %294 : vector<2x1xi1> to vector<2x32xi1>
    %296 = arith.select %295, %293, %270 : vector<2x32xi1>, vector<2x32xf32>
    %297 = vector.shape_cast %124 : vector<2x1xi1> to vector<2x1xi1>
    %298 = vector.broadcast %297 : vector<2x1xi1> to vector<2x32xi1>
    %299 = arith.select %298, %291, %273 : vector<2x32xi1>, vector<2x32xf32>
    %300 = vector.broadcast %140 : vector<2x1xf32> to vector<2x32xf32>
    %301 = arith.mulf %300, %293 : vector<2x32xf32>
    %c10 = arith.constant 10 : index
    %c0_49 = arith.constant 0 : index
    %302 = vector.load %arg6[%c10, %c0_49] : memref<16x33xf32, #tpu.memory_space<vmem>>, vector<2x32xf32>
    tpu.vector_store %arg6[%c10, %c0_49], %301 {strides = array<i32>} : memref<16x33xf32, #tpu.memory_space<vmem>>, vector<2x32xf32>,
    %303 = vector.extract_strided_slice %96 {offsets = [12, 0], sizes = [2, 128], strides = [1, 1]} : vector<16x128xf32> to vector<2x128xf32>
    %304 = arith.truncf %296 : vector<2x32xf32> to vector<2x32xbf16>
    %cst_50 = arith.constant dense<0.000000e+00> : vector<2x128xf32>
    %305 = tpu.matmul %304, %97, %cst_50 {dimension_numbers = #tpu.dot_dimension_numbers<[1], [0], [0], [1], [0, 0, 1, 1], [], []>} : vector<2x32xbf16>, vector<32x128xbf16>, vector<2x128xf32> -> vector<2x128xf32>
    %306 = arith.addf %303, %305 : vector<2x128xf32>
    %307 = arith.mulf %306, %106 : vector<2x128xf32>
    %308 = math.tanh %307 : vector<2x128xf32>
    %309 = arith.mulf %109, %308 : vector<2x128xf32>
    %310 = arith.addf %309, %112 : vector<2x128xf32>
    %311 = vector.extract_strided_slice %310 {offsets = [0, 0], sizes = [2, 32], strides = [1, 1]} : vector<2x128xf32> to vector<2x32xf32>
    %312 = vector.extract_strided_slice %310 {offsets = [0, 32], sizes = [2, 32], strides = [1, 1]} : vector<2x128xf32> to vector<2x32xf32>
    %313 = vector.extract_strided_slice %310 {offsets = [0, 64], sizes = [2, 32], strides = [1, 1]} : vector<2x128xf32> to vector<2x32xf32>
    %314 = vector.extract_strided_slice %310 {offsets = [0, 96], sizes = [2, 32], strides = [1, 1]} : vector<2x128xf32> to vector<2x32xf32>
    %315 = arith.mulf %312, %299 : vector<2x32xf32>
    %316 = arith.mulf %311, %313 : vector<2x32xf32>
    %317 = arith.addf %315, %316 : vector<2x32xf32>
    %318 = math.tanh %317 : vector<2x32xf32>
    %319 = arith.mulf %314, %318 : vector<2x32xf32>
    %320 = vector.shape_cast %126 : vector<2x1xi1> to vector<2x1xi1>
    %321 = vector.broadcast %320 : vector<2x1xi1> to vector<2x32xi1>
    %322 = arith.select %321, %319, %296 : vector<2x32xi1>, vector<2x32xf32>
    %323 = vector.shape_cast %126 : vector<2x1xi1> to vector<2x1xi1>
    %324 = vector.broadcast %323 : vector<2x1xi1> to vector<2x32xi1>
    %325 = arith.select %324, %317, %299 : vector<2x32xi1>, vector<2x32xf32>
    %326 = vector.broadcast %142 : vector<2x1xf32> to vector<2x32xf32>
    %327 = arith.mulf %326, %319 : vector<2x32xf32>
    %c12 = arith.constant 12 : index
    %c0_51 = arith.constant 0 : index
    %328 = vector.load %arg6[%c12, %c0_51] : memref<16x33xf32, #tpu.memory_space<vmem>>, vector<2x32xf32>
    tpu.vector_store %arg6[%c12, %c0_51], %327 {strides = array<i32>} : memref<16x33xf32, #tpu.memory_space<vmem>>, vector<2x32xf32>,
    %329 = vector.extract_strided_slice %96 {offsets = [14, 0], sizes = [2, 128], strides = [1, 1]} : vector<16x128xf32> to vector<2x128xf32>
    %330 = arith.truncf %322 : vector<2x32xf32> to vector<2x32xbf16>
    %cst_52 = arith.constant dense<0.000000e+00> : vector<2x128xf32>
    %331 = tpu.matmul %330, %97, %cst_52 {dimension_numbers = #tpu.dot_dimension_numbers<[1], [0], [0], [1], [0, 0, 1, 1], [], []>} : vector<2x32xbf16>, vector<32x128xbf16>, vector<2x128xf32> -> vector<2x128xf32>
    %332 = arith.addf %329, %331 : vector<2x128xf32>
    %333 = arith.mulf %332, %106 : vector<2x128xf32>
    %334 = math.tanh %333 : vector<2x128xf32>
    %335 = arith.mulf %109, %334 : vector<2x128xf32>
    %336 = arith.addf %335, %112 : vector<2x128xf32>
    %337 = vector.extract_strided_slice %336 {offsets = [0, 0], sizes = [2, 32], strides = [1, 1]} : vector<2x128xf32> to vector<2x32xf32>
    %338 = vector.extract_strided_slice %336 {offsets = [0, 32], sizes = [2, 32], strides = [1, 1]} : vector<2x128xf32> to vector<2x32xf32>
    %339 = vector.extract_strided_slice %336 {offsets = [0, 64], sizes = [2, 32], strides = [1, 1]} : vector<2x128xf32> to vector<2x32xf32>
    %340 = vector.extract_strided_slice %336 {offsets = [0, 96], sizes = [2, 32], strides = [1, 1]} : vector<2x128xf32> to vector<2x32xf32>
    %341 = arith.mulf %338, %325 : vector<2x32xf32>
    %342 = arith.mulf %337, %339 : vector<2x32xf32>
    %343 = arith.addf %341, %342 : vector<2x32xf32>
    %344 = math.tanh %343 : vector<2x32xf32>
    %345 = arith.mulf %340, %344 : vector<2x32xf32>
    %346 = vector.broadcast %144 : vector<2x1xf32> to vector<2x32xf32>
    %347 = arith.mulf %346, %345 : vector<2x32xf32>
    %c14 = arith.constant 14 : index
    %c0_53 = arith.constant 0 : index
    %348 = vector.load %arg6[%c14, %c0_53] : memref<16x33xf32, #tpu.memory_space<vmem>>, vector<2x32xf32>
    tpu.vector_store %arg6[%c14, %c0_53], %347 {strides = array<i32>} : memref<16x33xf32, #tpu.memory_space<vmem>>, vector<2x32xf32>,
    %c0_54 = arith.constant 0 : index
    %c0_55 = arith.constant 0 : index
    %349 = vector.load %arg6[%c0_54, %c0_55] : memref<16x33xf32, #tpu.memory_space<vmem>>, vector<16x33xf32>
    %cst_56 = arith.constant dense<0.000000e+00> : vector<16x16xf32>
    %350 = tpu.matmul %349, %4, %cst_56 {dimension_numbers = #tpu.dot_dimension_numbers<[1], [0], [0], [1], [0, 0, 1, 1], [], []>} : vector<16x33xf32>, vector<33x16xf32>, vector<16x16xf32> -> vector<16x16xf32>
    %c0_57 = arith.constant 0 : index
    %c0_58 = arith.constant 0 : index
    %351 = vector.load %arg5[%c0_57, %c0_58] : memref<16x16xf32, #tpu.memory_space<vmem>>, vector<16x16xf32>
    tpu.vector_store %arg5[%c0_57, %c0_58], %350 {strides = array<i32>} : memref<16x16xf32, #tpu.memory_space<vmem>>, vector<16x16xf32>,
    return
  }
}

</mosaic_0001>

<llo_original>
// kernel: encoder_decoder_forward.1
$region0: #{encoder_decoder_forward.1}
  #allocation0 [shape = 'u32[]', space=smem, size = 0x4, offset = 0x4, fixed_abs, tag = 'smem constant byte address 0x4 - core index']
  #allocation1 [shape = 'u32[144,128]{1,0:T(1,128)}', space=vmem, size = 0x12000, scoped, tag = 'internal scratch']
  #allocation2 [shape = 'f32[16,33]{1,0:T(8,128)}', space=vmem, size = 0x2000, scoped, tag = 'scratch operand']
  %s0 = inlined_call_operand.hbm [shape: f32[16,16], index: 0, kind: input, shape index: {}]
  %s1 = inlined_call_operand.vmem [shape: s32[2,1], index: 1, kind: input, shape index: {}]
  %s2 = inlined_call_operand.hbm [shape: f32[80,128], index: 2, kind: input, shape index: {}]
  %s3 = inlined_call_operand.hbm [shape: f32[81,64], index: 3, kind: input, shape index: {}]
  %s4 = inlined_call_operand.vmem [shape: f32[1,384], index: 4, kind: input, shape index: {}]
  %s5 = inlined_call_operand.hbm [shape: f32[16,16], index: 5, kind: output, shape index: {}]
  %s6 = sld [smem:[#allocation0]]
  $region42: #{encoder_decoder_forward.1} parent=0
    _
  %s8 = ssub.s32 1, %s6
  %s9 = scalar_select 0, %s8, %s6
  $region1: #{encoder_decoder_forward.1} parent=0
    #allocation3 [shape = 'u8[8192]{0}', space=vmem, size = 0x2000, scoped, tag = 'input window, operand 0, single buffered']
    #allocation4 [shape = 's32[1]{0}', space=sflag, size = 0x4, scoped, tag = 'scoped memory for encoder_decoder_forward.1']
    #allocation5 [shape = 's32[1]{0}', space=sflag, size = 0x4, scoped, tag = 'scoped memory for encoder_decoder_forward.1']
    #allocation6 [shape = 'u8[40960]{0}', space=vmem, size = 0xa000, scoped, tag = 'input window, operand 2, single buffered']
    #allocation7 [shape = 's32[1]{0}', space=sflag, size = 0x4, scoped, tag = 'scoped memory for encoder_decoder_forward.1']
    #allocation8 [shape = 'u8[45056]{0}', space=vmem, size = 0xb000, scoped, tag = 'input window, operand 3, single buffered']
    #allocation9 [shape = 'u8[8192]{0}', space=vmem, size = 0x2000, scoped, tag = 'output window, operand 0, single buffered']
    %10 = vsyncpa [#allocation4], 0
    %11 = vsyncpa [#allocation7], 0
    %12 = vsyncpa [#allocation5], 0
    // Predicated region
    $region2: #{encoder_decoder_forward.1} parent=1 // pred_check
      _
    $region3: #{encoder_decoder_forward.1} parent=1 // pred_check_branch
      %14 = sbr.rel (0) target = $region5
    $region4: #{encoder_decoder_forward.1} parent=1 // pred_region
      %s16 = ssub.s32 256, 256
      %17 = vsyncadd [#allocation4], %s16
      %s18 = sshll.u32 [#allocation3], 4
      %s19 = int_to_ptr.vmem [resolvable:$true] %s18
      %24 = dma.hbm_to_vmem [thread:$0]  %s0, 256, %s19, [#allocation4], 128, 128, 8
    $region5: #{encoder_decoder_forward.1} parent=1 // pred_fallthru
      _
    // Predicated region
    $region6: #{encoder_decoder_forward.1} parent=1 // pred_check
      _
    $region7: #{encoder_decoder_forward.1} parent=1 // pred_check_branch
      %26 = sbr.rel (0) target = $region9
    $region8: #{encoder_decoder_forward.1} parent=1 // pred_region
      _
    $region9: #{encoder_decoder_forward.1} parent=1 // pred_fallthru
      _
    // Predicated region
    $region10: #{encoder_decoder_forward.1} parent=1 // pred_check
      _
    $region11: #{encoder_decoder_forward.1} parent=1 // pred_check_branch
      %28 = sbr.rel (0) target = $region13
    $region12: #{encoder_decoder_forward.1} parent=1 // pred_region
      %s30 = ssub.s32 1280, 1280
      %31 = vsyncadd [#allocation7], %s30
      %s32 = sshll.u32 [#allocation6], 4
      %s33 = int_to_ptr.vmem [resolvable:$true] %s32
      %38 = dma.hbm_to_vmem [thread:$0]  %s2, 1280, %s33, [#allocation7], 128, 128, 8
    $region13: #{encoder_decoder_forward.1} parent=1 // pred_fallthru
      _
    // Predicated region
    $region14: #{encoder_decoder_forward.1} parent=1 // pred_check
      _
    $region15: #{encoder_decoder_forward.1} parent=1 // pred_check_branch
      %40 = sbr.rel (0) target = $region17
    $region16: #{encoder_decoder_forward.1} parent=1 // pred_region
      %s42 = ssub.s32 1408, 1408
      %43 = vsyncadd [#allocation7], %s42
      %s44 = sshll.u32 [#allocation8], 4
      %s45 = int_to_ptr.vmem [resolvable:$true] %s44
      %50 = dma.hbm_to_vmem [thread:$0]  %s3, 1408, %s45, [#allocation7], 128, 128, 8
    $region17: #{encoder_decoder_forward.1} parent=1 // pred_fallthru
      _
    // Predicated region
    $region18: #{encoder_decoder_forward.1} parent=1 // pred_check
      _
    $region19: #{encoder_decoder_forward.1} parent=1 // pred_check_branch
      %52 = sbr.rel (0) target = $region21
    $region20: #{encoder_decoder_forward.1} parent=1 // pred_region
      _
    $region21: #{encoder_decoder_forward.1} parent=1 // pred_fallthru
      _
    // Predicated region
    $region22: #{encoder_decoder_forward.1} parent=1 // pred_check
      _
    $region23: #{encoder_decoder_forward.1} parent=1 // pred_check_branch
      %54 = sbr.rel (0) target = $region25
    $region24: #{encoder_decoder_forward.1} parent=1 // pred_region
      %55 = dma.done [#allocation4], 256
    $region25: #{encoder_decoder_forward.1} parent=1 // pred_fallthru
      _
    // Predicated region
    $region26: #{encoder_decoder_forward.1} parent=1 // pred_check
      _
    $region27: #{encoder_decoder_forward.1} parent=1 // pred_check_branch
      %57 = sbr.rel (0) target = $region29
    $region28: #{encoder_decoder_forward.1} parent=1 // pred_region
      %58 = dma.done [#allocation7], 1280
    $region29: #{encoder_decoder_forward.1} parent=1 // pred_fallthru
      _
    // Predicated region
    $region30: #{encoder_decoder_forward.1} parent=1 // pred_check
      _
    $region31: #{encoder_decoder_forward.1} parent=1 // pred_check_branch
      %60 = sbr.rel (0) target = $region33
    $region32: #{encoder_decoder_forward.1} parent=1 // pred_region
      %61 = dma.done [#allocation7], 1408
    $region33: #{encoder_decoder_forward.1} parent=1 // pred_fallthru
      _
    %v63 = vld [vmem:[%s1] sm:$0x3]
    %v64 = vld [vmem:[#allocation3] sm:$0xff]
    %v65 = vld [vmem:[#allocation3 + $0x8] sm:$0xff]
    %v66 = vld [vmem:[#allocation8] sm:$0xff]
    %v67 = vld [vmem:[#allocation8 + $0x8] sm:$0xff]
    %v68 = vld [vmem:[#allocation8 + $0x10] sm:$0xff]
    %v69 = vld [vmem:[#allocation8 + $0x18] sm:$0xff]
    %v70 = vld [vmem:[#allocation8 + $0x20] sm:$0xff]
    %v71 = vld [vmem:[#allocation8 + $0x28] sm:$0xff]
    %v72 = vld [vmem:[#allocation8 + $0x30] sm:$0xff]
    %v73 = vld [vmem:[#allocation8 + $0x38] sm:$0xff]
    %v74 = vld [vmem:[#allocation8 + $0x40] sm:$0xff]
    %v75 = vld [vmem:[#allocation8 + $0x48] sm:$0xff]
    %v76 = vld [vmem:[#allocation8 + $0x50] sm:$0x1]
    %v77 = vld [vmem:[#allocation6] sm:$0xff]
    %v78 = vld [vmem:[#allocation6 + $0x8] sm:$0xff]
    %v79 = vld [vmem:[#allocation6 + $0x10] sm:$0xff]
    %v80 = vld [vmem:[#allocation6 + $0x18] sm:$0xff]
    %v81 = vld [vmem:[#allocation6 + $0x20] sm:$0xff]
    %v82 = vld [vmem:[#allocation6 + $0x28] sm:$0xff]
    %v83 = vld [vmem:[#allocation6 + $0x30] sm:$0xff]
    %v84 = vld [vmem:[#allocation6 + $0x38] sm:$0xff]
    %v85 = vld [vmem:[#allocation6 + $0x40] sm:$0xff]
    %v86 = vld [vmem:[#allocation6 + $0x48] sm:$0xff]
    %v87 = vld [vmem:[%s4] sm:$0x1]
    %v88 = vld [vmem:[%s4 + $0x1] sm:$0x1]
    %v89 = vld [vmem:[%s4 + $0x2] sm:$0x1]
    %vm90 = vcmp.gt.s32.totalorder %v63, 0
    %v91 = vsel %vm90, 1, 0
    %v92 = vcvt.s32.f32 %v91
    %94 = vset.pattern.permute.xlu0 0
    %95 = vperm.xlu0 %94, %v92
    %v96 = vpop.permute.xlu0 %95
    %v98 = vmul.f32 %v64, %v96
    %vm99 = vcmp.gt.s32.totalorder %v63, 1
    %v100 = vsel %vm99, 1, 0
    %v101 = vcvt.s32.f32 %v100
    %103 = vset.pattern.permute.xlu0 0
    %104 = vperm.xlu0 %103, %v101
    %v105 = vpop.permute.xlu0 %104
    %v106 = vrot.slane %v105, 6
    %v108 = vmul.f32 %v64, %v106
    %vm109 = vcmp.gt.s32.totalorder %v63, 2
    %v110 = vsel %vm109, 1, 0
    %v111 = vcvt.s32.f32 %v110
    %113 = vset.pattern.permute.xlu0 0
    %114 = vperm.xlu0 %113, %v111
    %v115 = vpop.permute.xlu0 %114
    %v116 = vrot.slane %v115, 4
    %v118 = vmul.f32 %v64, %v116
    %vm119 = vcmp.gt.s32.totalorder %v63, 3
    %v120 = vsel %vm119, 1, 0
    %v121 = vcvt.s32.f32 %v120
    %123 = vset.pattern.permute.xlu0 0
    %124 = vperm.xlu0 %123, %v121
    %v125 = vpop.permute.xlu0 %124
    %v126 = vrot.slane %v125, 2
    %v128 = vmul.f32 %v64, %v126
    %vm129 = vcmp.gt.s32.totalorder %v63, 4
    %v130 = vsel %vm129, 1, 0
    %v131 = vcvt.s32.f32 %v130
    %133 = vset.pattern.permute.xlu0 0
    %134 = vperm.xlu0 %133, %v131
    %v135 = vpop.permute.xlu0 %134
    %v137 = vmul.f32 %v65, %v135
    %vm138 = vcmp.gt.s32.totalorder %v63, 5
    %v139 = vsel %vm138, 1, 0
    %v140 = vcvt.s32.f32 %v139
    %142 = vset.pattern.permute.xlu0 0
    %143 = vperm.xlu0 %142, %v140
    %v144 = vpop.permute.xlu0 %143
    %v145 = vrot.slane %v144, 6
    %v147 = vmul.f32 %v65, %v145
    %vm148 = vcmp.gt.s32.totalorder %v63, 6
    %v149 = vsel %vm148, 1, 0
    %v150 = vcvt.s32.f32 %v149
    %152 = vset.pattern.permute.xlu0 0
    %153 = vperm.xlu0 %152, %v150
    %v154 = vpop.permute.xlu0 %153
    %v155 = vrot.slane %v154, 4
    %v157 = vmul.f32 %v65, %v155
    %vm158 = vcmp.gt.s32.totalorder %v63, 7
    %v159 = vsel %vm158, 1, 0
    %v160 = vcvt.s32.f32 %v159
    %162 = vset.pattern.permute.xlu0 0
    %163 = vperm.xlu0 %162, %v160
    %v164 = vpop.permute.xlu0 %163
    %v165 = vrot.slane %v164, 2
    %v167 = vmul.f32 %v65, %v165
    %v169 = vrot.slane %v108, 2
    %v171 = vadd.f32 %v98, %v169
    %v173 = vrot.slane %v128, 2
    %v175 = vadd.f32 %v118, %v173
    %v177 = vrot.slane %v147, 2
    %v179 = vadd.f32 %v137, %v177
    %v181 = vrot.slane %v167, 2
    %v183 = vadd.f32 %v157, %v181
    %v185 = vrot.slane %v175, 4
    %v187 = vadd.f32 %v171, %v185
    %v189 = vrot.slane %v183, 4
    %v191 = vadd.f32 %v179, %v189
    %v192 = vadd.f32 %v187, %v191
    %v193 = vcvt.s32.f32 %v63
    %v194 = vmin.f32 %v193, 8.0
    %v195 = vmax.f32 %v194, 1.0
    %197 = vset.pattern.permute.xlu0 0
    %198 = vperm.xlu0 %197, %v195
    %v199 = vpop.permute.xlu0 %198
    %v201 = vrcp.pop %v199
    %v202 = vmul.f32 %v192, %v201
    %v204 = vlaneseq
    %v205 = vshrl.u32 %v204, 7
    %v206 = vsub.s32 0, %v205
    %v207 = vrot.slane %v87, %v206
    %vm209 = vcmask 130048
    %v211 = vsel %vm209, %v202, 0
    %213 = vmatprep.subr.mxu0 0.0
    %214 = vmatpush1.msra.mxu0 0.0
    %215 = vmatprep.subr.mxu0 0.0
    %216 = vmatpush1.msra.mxu0 0.0
    %217 = vmatprep.subr.mxu0 0.0
    %218 = vmatpush1.msra.mxu0 0.0
    %219 = vmatprep.subr.mxu0 0.0
    %220 = vmatpush1.msra.mxu0 0.0
    %221 = vmatprep.subr.mxu0 0.0
    %222 = vmatpush1.msra.mxu0 0.0
    %223 = vmatprep.subr.mxu0 0.0
    %224 = vmatpush1.msra.mxu0 0.0
    %225 = vmatprep.subr.mxu0 0.0
    %226 = vmatpush1.msra.mxu0 0.0
    %227 = vmatprep.subr.mxu0 0.0
    %228 = vmatpush1.msra.mxu0 0.0
    %229 = vmatprep.subr.mxu0 0.0
    %230 = vmatpush1.msra.mxu0 0.0
    %231 = vmatprep.subr.mxu0 0.0
    %232 = vmatpush1.msra.mxu0 0.0
    %233 = vmatprep.subr.mxu0 0.0
    %234 = vmatpush1.msra.mxu0 0.0
    %235 = vmatprep.subr.mxu0 0.0
    %236 = vmatpush1.msra.mxu0 0.0
    %237 = vmatprep.subr.mxu0 0.0
    %238 = vmatpush1.msra.mxu0 0.0
    %239 = vmatprep.subr.mxu0 0.0
    %240 = vmatpush1.msra.mxu0 0.0
    %241 = vmatprep.subr.mxu0 0.0
    %242 = vmatpush1.msra.mxu0 %v67
    %243 = vmatprep.subr.mxu0 0.0
    %244 = vmatpush1.msra.mxu0 %v66
    %245 = vmatprep.subr.mxu0 0.0
    %246 = vmatpush2.msra.mxu0 0.0
    %247 = vmatprep.subr.mxu0 0.0
    %248 = vmatpush2.msra.mxu0 0.0
    %249 = vmatprep.subr.mxu0 0.0
    %250 = vmatpush2.msra.mxu0 0.0
    %251 = vmatprep.subr.mxu0 0.0
    %252 = vmatpush2.msra.mxu0 0.0
    %253 = vmatprep.subr.mxu0 0.0
    %254 = vmatpush2.msra.mxu0 0.0
    %255 = vmatprep.subr.mxu0 0.0
    %256 = vmatpush2.msra.mxu0 0.0
    %257 = vmatprep.subr.mxu0 0.0
    %258 = vmatpush2.msra.mxu0 0.0
    %259 = vmatprep.subr.mxu0 0.0
    %260 = vmatpush2.msra.mxu0 0.0
    %261 = vmatprep.subr.mxu0 0.0
    %262 = vmatpush2.msra.mxu0 0.0
    %263 = vmatprep.subr.mxu0 0.0
    %264 = vmatpush2.msra.mxu0 0.0
    %265 = vmatprep.subr.mxu0 0.0
    %266 = vmatpush2.msra.mxu0 0.0
    %267 = vmatprep.subr.mxu0 0.0
    %268 = vmatpush2.msra.mxu0 0.0
    %269 = vmatprep.subr.mxu0 0.0
    %270 = vmatpush2.msra.mxu0 0.0
    %271 = vmatprep.subr.mxu0 0.0
    %272 = vmatpush2.msra.mxu0 0.0
    %273 = vmatprep.subr.mxu0 0.0
    %274 = vmatpush2.msra.mxu0 0.0
    %275 = vmatprep.subr.mxu0 0.0
    %276 = vmatpush2.msra.mxu0 0.0
    %277 = vmatprep.mubr.f32.mxu0 0.0
    %278 = vmatmul.mubr.f32.gmra.mxu0 %v211
    %v279 = vpop.f32.mrf.mxu0
    %v280 = vadd.f32 %v207, %v279
    %v281 = vpop.f32.mrf.mxu0
    %282 = vdwg.mxu0
    %v283 = vtanh.pop %v280
    %v285 = vlaneseq
    %v286 = vshrl.u32 %v285, 7
    %v287 = vsub.s32 0, %v286
    %v288 = vrot.slane %v88, %v287
    %vm290 = vcmask 261120
    %v292 = vsel %vm290, %v283, 0
    %294 = vmatprep.subr.mxu0 0.0
    %295 = vmatpush1.msra.mxu0 0.0
    %296 = vmatprep.subr.mxu0 0.0
    %297 = vmatpush1.msra.mxu0 0.0
    %298 = vmatprep.subr.mxu0 0.0
    %299 = vmatpush1.msra.mxu0 0.0
    %300 = vmatprep.subr.mxu0 0.0
    %301 = vmatpush1.msra.mxu0 0.0
    %302 = vmatprep.subr.mxu0 0.0
    %303 = vmatpush1.msra.mxu0 0.0
    %304 = vmatprep.subr.mxu0 0.0
    %305 = vmatpush1.msra.mxu0 0.0
    %306 = vmatprep.subr.mxu0 0.0
    %307 = vmatpush1.msra.mxu0 0.0
    %308 = vmatprep.subr.mxu0 0.0
    %309 = vmatpush1.msra.mxu0 0.0
    %310 = vmatprep.subr.mxu0 0.0
    %311 = vmatpush1.msra.mxu0 0.0
    %312 = vmatprep.subr.mxu0 0.0
    %313 = vmatpush1.msra.mxu0 0.0
    %314 = vmatprep.subr.mxu0 0.0
    %315 = vmatpush1.msra.mxu0 0.0
    %316 = vmatprep.subr.mxu0 0.0
    %317 = vmatpush1.msra.mxu0 0.0
    %318 = vmatprep.subr.mxu0 0.0
    %319 = vmatpush1.msra.mxu0 %v71
    %320 = vmatprep.subr.mxu0 0.0
    %321 = vmatpush1.msra.mxu0 %v70
    %322 = vmatprep.subr.mxu0 0.0
    %323 = vmatpush1.msra.mxu0 %v69
    %324 = vmatprep.subr.mxu0 0.0
    %325 = vmatpush1.msra.mxu0 %v68
    %326 = vmatprep.subr.mxu0 0.0
    %327 = vmatpush2.msra.mxu0 0.0
    %328 = vmatprep.subr.mxu0 0.0
    %329 = vmatpush2.msra.mxu0 0.0
    %330 = vmatprep.subr.mxu0 0.0
    %331 = vmatpush2.msra.mxu0 0.0
    %332 = vmatprep.subr.mxu0 0.0
    %333 = vmatpush2.msra.mxu0 0.0
    %334 = vmatprep.subr.mxu0 0.0
    %335 = vmatpush2.msra.mxu0 0.0
    %336 = vmatprep.subr.mxu0 0.0
    %337 = vmatpush2.msra.mxu0 0.0
    %338 = vmatprep.subr.mxu0 0.0
    %339 = vmatpush2.msra.mxu0 0.0
    %340 = vmatprep.subr.mxu0 0.0
    %341 = vmatpush2.msra.mxu0 0.0
    %342 = vmatprep.subr.mxu0 0.0
    %343 = vmatpush2.msra.mxu0 0.0
    %344 = vmatprep.subr.mxu0 0.0
    %345 = vmatpush2.msra.mxu0 0.0
    %346 = vmatprep.subr.mxu0 0.0
    %347 = vmatpush2.msra.mxu0 0.0
    %348 = vmatprep.subr.mxu0 0.0
    %349 = vmatpush2.msra.mxu0 0.0
    %350 = vmatprep.subr.mxu0 0.0
    %351 = vmatpush2.msra.mxu0 0.0
    %352 = vmatprep.subr.mxu0 0.0
    %353 = vmatpush2.msra.mxu0 0.0
    %354 = vmatprep.subr.mxu0 0.0
    %355 = vmatpush2.msra.mxu0 0.0
    %356 = vmatprep.subr.mxu0 0.0
    %357 = vmatpush2.msra.mxu0 0.0
    %358 = vmatprep.mubr.f32.mxu0 0.0
    %359 = vmatmul.mubr.f32.gmra.mxu0 %v292
    %v360 = vpop.f32.mrf.mxu0
    %v361 = vadd.f32 %v288, %v360
    %v362 = vpop.f32.mrf.mxu0
    %363 = vdwg.mxu0
    %v364 = vtanh.pop %v361
    %v366 = vlaneseq
    %v367 = vshrl.u32 %v366, 7
    %v368 = vsub.s32 0, %v367
    %v369 = vrot.slane %v89, %v368
    %371 = vmatprep.subr.mxu0 0.0
    %372 = vmatpush1.msra.mxu0 0.0
    %373 = vmatprep.subr.mxu0 0.0
    %374 = vmatpush1.msra.mxu0 0.0
    %375 = vmatprep.subr.mxu0 0.0
    %376 = vmatpush1.msra.mxu0 0.0
    %377 = vmatprep.subr.mxu0 0.0
    %378 = vmatpush1.msra.mxu0 0.0
    %379 = vmatprep.subr.mxu0 0.0
    %380 = vmatpush1.msra.mxu0 0.0
    %381 = vmatprep.subr.mxu0 0.0
    %382 = vmatpush1.msra.mxu0 0.0
    %383 = vmatprep.subr.mxu0 0.0
    %384 = vmatpush1.msra.mxu0 0.0
    %385 = vmatprep.subr.mxu0 0.0
    %386 = vmatpush1.msra.mxu0 0.0
    %387 = vmatprep.subr.mxu0 0.0
    %388 = vmatpush1.msra.mxu0 0.0
    %389 = vmatprep.subr.mxu0 0.0
    %390 = vmatpush1.msra.mxu0 0.0
    %391 = vmatprep.subr.mxu0 0.0
    %392 = vmatpush1.msra.mxu0 0.0
    %393 = vmatprep.subr.mxu0 0.0
    %394 = vmatpush1.msra.mxu0 0.0
    %395 = vmatprep.subr.mxu0 0.0
    %396 = vmatpush1.msra.mxu0 %v82
    %397 = vmatprep.subr.mxu0 0.0
    %398 = vmatpush1.msra.mxu0 %v81
    %399 = vmatprep.subr.mxu0 0.0
    %400 = vmatpush1.msra.mxu0 %v80
    %401 = vmatprep.subr.mxu0 0.0
    %402 = vmatpush1.msra.mxu0 %v79
    %403 = vmatprep.subr.mxu0 0.0
    %404 = vmatpush2.msra.mxu0 0.0
    %405 = vmatprep.subr.mxu0 0.0
    %406 = vmatpush2.msra.mxu0 0.0
    %407 = vmatprep.subr.mxu0 0.0
    %408 = vmatpush2.msra.mxu0 0.0
    %409 = vmatprep.subr.mxu0 0.0
    %410 = vmatpush2.msra.mxu0 0.0
    %411 = vmatprep.subr.mxu0 0.0
    %412 = vmatpush2.msra.mxu0 0.0
    %413 = vmatprep.subr.mxu0 0.0
    %414 = vmatpush2.msra.mxu0 0.0
    %415 = vmatprep.subr.mxu0 0.0
    %416 = vmatpush2.msra.mxu0 0.0
    %417 = vmatprep.subr.mxu0 0.0
    %418 = vmatpush2.msra.mxu0 0.0
    %419 = vmatprep.subr.mxu0 0.0
    %420 = vmatpush2.msra.mxu0 0.0
    %421 = vmatprep.subr.mxu0 0.0
    %422 = vmatpush2.msra.mxu0 0.0
    %423 = vmatprep.subr.mxu0 0.0
    %424 = vmatpush2.msra.mxu0 0.0
    %425 = vmatprep.subr.mxu0 0.0
    %426 = vmatpush2.msra.mxu0 0.0
    %427 = vmatprep.subr.mxu0 0.0
    %428 = vmatpush2.msra.mxu0 0.0
    %429 = vmatprep.subr.mxu0 0.0
    %430 = vmatpush2.msra.mxu0 0.0
    %431 = vmatprep.subr.mxu0 0.0
    %432 = vmatpush2.msra.mxu0 0.0
    %433 = vmatprep.subr.mxu0 0.0
    %434 = vmatpush2.msra.mxu0 0.0
    %435 = vmatprep.mubr.f32.mxu0 0.0
    %436 = vmatmul.mubr.f32.gmra.mxu0 %v292
    %v437 = vpop.f32.mrf.mxu0
    %v438 = vadd.f32 %v369, %v437
    %v439 = vpop.f32.mrf.mxu0
    %440 = vdwg.mxu0
    %v442 = vrot.slane %v438, 6
    %v444 = vrot.slane %v438, 4
    %v446 = vrot.slane %v438, 2
    %vm448 = vcmask 1041408
    %v449 = vsel %vm448, %v438, %v442
    %vm450 = vcmask 1043456
    %v451 = vsel %vm450, %v449, %v444
    %vm452 = vcmask 1045504
    %v453 = vsel %vm452, %v451, %v446
    %v455 = vsel %vm209, %v64, 0
    %v458 = vsel %vm209, %v65, 0
    %460 = vmatprep.subr.mxu0 0.0
    %461 = vmatpush1.msra.mxu0 0.0
    %462 = vmatprep.subr.mxu0 0.0
    %463 = vmatpush1.msra.mxu0 0.0
    %464 = vmatprep.subr.mxu0 0.0
    %465 = vmatpush1.msra.mxu0 0.0
    %466 = vmatprep.subr.mxu0 0.0
    %467 = vmatpush1.msra.mxu0 0.0
    %468 = vmatprep.subr.mxu0 0.0
    %469 = vmatpush1.msra.mxu0 0.0
    %470 = vmatprep.subr.mxu0 0.0
    %471 = vmatpush1.msra.mxu0 0.0
    %472 = vmatprep.subr.mxu0 0.0
    %473 = vmatpush1.msra.mxu0 0.0
    %474 = vmatprep.subr.mxu0 0.0
    %475 = vmatpush1.msra.mxu0 0.0
    %476 = vmatprep.subr.mxu0 0.0
    %477 = vmatpush1.msra.mxu0 0.0
    %478 = vmatprep.subr.mxu0 0.0
    %479 = vmatpush1.msra.mxu0 0.0
    %480 = vmatprep.subr.mxu0 0.0
    %481 = vmatpush1.msra.mxu0 0.0
    %482 = vmatprep.subr.mxu0 0.0
    %483 = vmatpush1.msra.mxu0 0.0
    %484 = vmatprep.subr.mxu0 0.0
    %485 = vmatpush1.msra.mxu0 0.0
    %486 = vmatprep.subr.mxu0 0.0
    %487 = vmatpush1.msra.mxu0 0.0
    %488 = vmatprep.subr.mxu0 0.0
    %489 = vmatpush1.msra.mxu0 %v78
    %490 = vmatprep.subr.mxu0 0.0
    %491 = vmatpush1.msra.mxu0 %v77
    %492 = vmatprep.subr.mxu0 0.0
    %493 = vmatpush2.msra.mxu0 0.0
    %494 = vmatprep.subr.mxu0 0.0
    %495 = vmatpush2.msra.mxu0 0.0
    %496 = vmatprep.subr.mxu0 0.0
    %497 = vmatpush2.msra.mxu0 0.0
    %498 = vmatprep.subr.mxu0 0.0
    %499 = vmatpush2.msra.mxu0 0.0
    %500 = vmatprep.subr.mxu0 0.0
    %501 = vmatpush2.msra.mxu0 0.0
    %502 = vmatprep.subr.mxu0 0.0
    %503 = vmatpush2.msra.mxu0 0.0
    %504 = vmatprep.subr.mxu0 0.0
    %505 = vmatpush2.msra.mxu0 0.0
    %506 = vmatprep.subr.mxu0 0.0
    %507 = vmatpush2.msra.mxu0 0.0
    %508 = vmatprep.subr.mxu0 0.0
    %509 = vmatpush2.msra.mxu0 0.0
    %510 = vmatprep.subr.mxu0 0.0
    %511 = vmatpush2.msra.mxu0 0.0
    %512 = vmatprep.subr.mxu0 0.0
    %513 = vmatpush2.msra.mxu0 0.0
    %514 = vmatprep.subr.mxu0 0.0
    %515 = vmatpush2.msra.mxu0 0.0
    %516 = vmatprep.subr.mxu0 0.0
    %517 = vmatpush2.msra.mxu0 0.0
    %518 = vmatprep.subr.mxu0 0.0
    %519 = vmatpush2.msra.mxu0 0.0
    %520 = vmatprep.subr.mxu0 0.0
    %521 = vmatpush2.msra.mxu0 0.0
    %522 = vmatprep.subr.mxu0 0.0
    %523 = vmatpush2.msra.mxu0 0.0
    %524 = vmatprep.mubr.f32.mxu0 0.0
    %525 = vmatmul.mubr.f32.gmra.mxu0 %v455
    %v526 = vpop.f32.mrf.mxu0
    %v527 = vadd.f32 %v453, %v526
    %v528 = vpop.f32.mrf.mxu0
    %529 = vmatprep.mubr.f32.mxu0 0.0
    %530 = vmatmul.mubr.f32.gmra.mxu0 %v458
    %v531 = vpop.f32.mrf.mxu0
    %v532 = vadd.f32 %v453, %v531
    %v533 = vpop.f32.mrf.mxu0
    %534 = vdwg.mxu0
    %v535 = vpack.c.bf16 %v84, %v83
    %v536 = vpack.c.bf16 %v86, %v85
    %v537 = vlaneseq
    %v538 = vand.u32 %v537, 127
    %vm539 = vcmp.ge.s32.totalorder %v538, 64
    %vm540 = vcmp.lt.s32.totalorder %v538, 96
    %vm541 = vmand %vm539, %vm540
    %v542 = vsel %vm541, 1.0, 0.5
    %v543 = vsel %vm541, 0.0, 0.5
    %v544 = vrot.slane %v101, 6
    %v546 = vrot.slane %v111, 4
    %v548 = vrot.slane %v121, 2
    %v550 = vrot.slane %v140, 6
    %v552 = vrot.slane %v150, 4
    %v554 = vrot.slane %v160, 2
    %v556 = vsel %vm448, %v92, %v544
    %v557 = vsel %vm450, %v556, %v546
    %v558 = vsel %vm452, %v557, %v548
    %v559 = vsel %vm448, %v131, %v550
    %v560 = vsel %vm450, %v559, %v552
    %v561 = vsel %vm452, %v560, %v554
    %564 = vrot.lane.b32.xlu0 %v558, 32
    %v565 = vpop.permute.xlu0 %564
    %566 = vrot.lane.b32.xlu0 %v561, 32
    %v567 = vpop.permute.xlu0 %566
    %vm570 = vcmask 269568
    %571 = vst.msk [vmem:[#allocation2] sm:$0xff] %vm570, %v565
    %572 = vst.msk [vmem:[#allocation2 + $0x8] sm:$0xff] %vm570, %v567
    %v573 = vpack.c.bf16 %v364, %v364
    %v575 = vsel %vm290, %v573, 0
    %577 = vmatprep.subr.bf16.mxu0 0
    %578 = vmatpush1.bf16.msra.mxu0 0
    %579 = vmatprep.subr.bf16.mxu0 0
    %580 = vmatpush1.bf16.msra.mxu0 0
    %581 = vmatprep.subr.bf16.mxu0 0
    %582 = vmatpush1.bf16.msra.mxu0 0
    %583 = vmatprep.subr.bf16.mxu0 0
    %584 = vmatpush1.bf16.msra.mxu0 0
    %585 = vmatprep.subr.bf16.mxu0 0
    %586 = vmatpush1.bf16.msra.mxu0 0
    %587 = vmatprep.subr.bf16.mxu0 0
    %588 = vmatpush1.bf16.msra.mxu0 0
    %589 = vmatprep.subr.bf16.mxu0 0
    %590 = vmatpush1.bf16.msra.mxu0 %v536
    %591 = vmatprep.subr.bf16.mxu0 0
    %592 = vmatpush1.bf16.msra.mxu0 %v535
    %593 = vmatprep.subr.bf16.mxu0 0
    %594 = vmatpush2.bf16.msra.mxu0 0
    %595 = vmatprep.subr.bf16.mxu0 0
    %596 = vmatpush2.bf16.msra.mxu0 0
    %597 = vmatprep.subr.bf16.mxu0 0
    %598 = vmatpush2.bf16.msra.mxu0 0
    %599 = vmatprep.subr.bf16.mxu0 0
    %600 = vmatpush2.bf16.msra.mxu0 0
    %601 = vmatprep.subr.bf16.mxu0 0
    %602 = vmatpush2.bf16.msra.mxu0 0
    %603 = vmatprep.subr.bf16.mxu0 0
    %604 = vmatpush2.bf16.msra.mxu0 0
    %605 = vmatprep.subr.bf16.mxu0 0
    %606 = vmatpush2.bf16.msra.mxu0 0
    %607 = vmatprep.subr.bf16.mxu0 0
    %608 = vmatpush2.bf16.msra.mxu0 0
    %609 = vmatprep.mubr.bf16.mxu0 0
    %610 = vmatmul.mubr.bf16.gmra.mxu0 %v575
    %v611 = vpop.f32.mrf.mxu0
    %v612 = vadd.f32 0.0, %v611
    %v613 = vpop.f32.mrf.mxu0
    %v614 = vpop.f32.mrf.mxu0
    %v615 = vpop.f32.mrf.mxu0
    %616 = vdwg.mxu0
    %v617 = vadd.f32 %v527, %v612
    %v618 = vmul.f32 %v617, %v542
    %v619 = vtanh.pop %v618
    %v620 = vmul.f32 %v542, %v619
    %v621 = vadd.f32 %v620, %v543
    %v622 = vmul.f32 %v621, %v364
    %624 = vrot.lane.b32.xlu0 %v621, 64
    %v625 = vpop.permute.xlu0 %624
    %v627 = vmul.f32 %v621, %v625
    %629 = vrot.lane.b32.xlu0 %v627, 32
    %v630 = vpop.permute.xlu0 %629
    %v632 = vadd.f32 %v622, %v630
    %v633 = vtanh.pop %v632
    %635 = vrot.lane.b32.xlu0 %v633, 64
    %v636 = vpop.permute.xlu0 %635
    %v638 = vmul.f32 %v621, %v636
    %639 = vset.pattern.permute.xlu0 0
    %640 = vperm.xlu0 %639, %v91
    %v641 = vpop.permute.xlu0 %640
    %vm642 = vcmp.eq.s32.totalorder %v641, 1
    %644 = vrot.lane.b32.xlu0 %v364, 96
    %v645 = vpop.permute.xlu0 %644
    %v647 = vsel %vm642, %v638, %v645
    %v648 = vsel %vm642, %v632, %v364
    %v649 = vmul.f32 %v96, %v638
    %651 = vrot.lane.b32.xlu0 %v649, 32
    %v652 = vpop.permute.xlu0 %651
    %vm654 = vcmask 254976
    %655 = vst.msk [vmem:[#allocation2] sm:$0x3] %vm654, %v652
    %v656 = vpack.c.bf16 %v647, %v647
    %658 = vrot.lane.b32.xlu0 %v656, 32
    %v659 = vpop.permute.xlu0 %658
    %v661 = vsel %vm290, %v659, 0
    %663 = vmatprep.subr.bf16.mxu0 0
    %664 = vmatpush1.bf16.msra.mxu0 0
    %665 = vmatprep.subr.bf16.mxu0 0
    %666 = vmatpush1.bf16.msra.mxu0 0
    %667 = vmatprep.subr.bf16.mxu0 0
    %668 = vmatpush1.bf16.msra.mxu0 0
    %669 = vmatprep.subr.bf16.mxu0 0
    %670 = vmatpush1.bf16.msra.mxu0 0
    %671 = vmatprep.subr.bf16.mxu0 0
    %672 = vmatpush1.bf16.msra.mxu0 0
    %673 = vmatprep.subr.bf16.mxu0 0
    %674 = vmatpush1.bf16.msra.mxu0 0
    %675 = vmatprep.subr.bf16.mxu0 0
    %676 = vmatpush1.bf16.msra.mxu0 %v536
    %677 = vmatprep.subr.bf16.mxu0 0
    %678 = vmatpush1.bf16.msra.mxu0 %v535
    %679 = vmatprep.subr.bf16.mxu0 0
    %680 = vmatpush2.bf16.msra.mxu0 0
    %681 = vmatprep.subr.bf16.mxu0 0
    %682 = vmatpush2.bf16.msra.mxu0 0
    %683 = vmatprep.subr.bf16.mxu0 0
    %684 = vmatpush2.bf16.msra.mxu0 0
    %685 = vmatprep.subr.bf16.mxu0 0
    %686 = vmatpush2.bf16.msra.mxu0 0
    %687 = vmatprep.subr.bf16.mxu0 0
    %688 = vmatpush2.bf16.msra.mxu0 0
    %689 = vmatprep.subr.bf16.mxu0 0
    %690 = vmatpush2.bf16.msra.mxu0 0
    %691 = vmatprep.subr.bf16.mxu0 0
    %692 = vmatpush2.bf16.msra.mxu0 0
    %693 = vmatprep.subr.bf16.mxu0 0
    %694 = vmatpush2.bf16.msra.mxu0 0
    %695 = vmatprep.mubr.bf16.mxu0 0
    %696 = vmatmul.mubr.bf16.gmra.mxu0 %v661
    %v697 = vpop.f32.mrf.mxu0
    %v698 = vadd.f32 0.0, %v697
    %v699 = vpop.f32.mrf.mxu0
    %v700 = vpop.f32.mrf.mxu0
    %v701 = vpop.f32.mrf.mxu0
    %702 = vdwg.mxu0
    %v704 = vrot.slane %v698, 6
    %v706 = vadd.f32 %v527, %v704
    %v707 = vmul.f32 %v706, %v542
    %v708 = vtanh.pop %v707
    %v709 = vmul.f32 %v542, %v708
    %v710 = vadd.f32 %v709, %v543
    %v712 = vrot.slane %v648, 6
    %v714 = vmul.f32 %v710, %v712
    %716 = vrot.lane.b32.xlu0 %v710, 64
    %v717 = vpop.permute.xlu0 %716
    %v719 = vmul.f32 %v710, %v717
    %721 = vrot.lane.b32.xlu0 %v719, 32
    %v722 = vpop.permute.xlu0 %721
    %v724 = vadd.f32 %v714, %v722
    %v725 = vtanh.pop %v724
    %727 = vrot.lane.b32.xlu0 %v725, 64
    %v728 = vpop.permute.xlu0 %727
    %v730 = vmul.f32 %v710, %v728
    %731 = vset.pattern.permute.xlu0 0
    %732 = vperm.xlu0 %731, %v100
    %v733 = vpop.permute.xlu0 %732
    %vm734 = vcmp.eq.s32.totalorder %v733, 1
    %v736 = vrot.slane %v730, 2
    %737 = vrot.lane.b32.xlu0 %v736, 32
    %v738 = vpop.permute.xlu0 %737
    %741 = vrot.lane.b32.xlu0 %v647, 32
    %v742 = vpop.permute.xlu0 %741
    %v744 = vsel %vm734, %v738, %v742
    %v746 = vrot.slane %v724, 2
    %747 = vrot.lane.b32.xlu0 %v746, 96
    %v748 = vpop.permute.xlu0 %747
    %750 = vrot.lane.b32.xlu0 %v648, 96
    %v751 = vpop.permute.xlu0 %750
    %v753 = vsel %vm734, %v748, %v751
    %v755 = vmul.f32 %v105, %v738
    %756 = vst.msk [vmem:[#allocation2 + $0x2] sm:$0x3] %vm654, %v755
    %v757 = vpack.c.bf16 %v744, %v744
    %v759 = vsel %vm290, %v757, 0
    %761 = vmatprep.subr.bf16.mxu0 0
    %762 = vmatpush1.bf16.msra.mxu0 0
    %763 = vmatprep.subr.bf16.mxu0 0
    %764 = vmatpush1.bf16.msra.mxu0 0
    %765 = vmatprep.subr.bf16.mxu0 0
    %766 = vmatpush1.bf16.msra.mxu0 0
    %767 = vmatprep.subr.bf16.mxu0 0
    %768 = vmatpush1.bf16.msra.mxu0 0
    %769 = vmatprep.subr.bf16.mxu0 0
    %770 = vmatpush1.bf16.msra.mxu0 0
    %771 = vmatprep.subr.bf16.mxu0 0
    %772 = vmatpush1.bf16.msra.mxu0 0
    %773 = vmatprep.subr.bf16.mxu0 0
    %774 = vmatpush1.bf16.msra.mxu0 %v536
    %775 = vmatprep.subr.bf16.mxu0 0
    %776 = vmatpush1.bf16.msra.mxu0 %v535
    %777 = vmatprep.subr.bf16.mxu0 0
    %778 = vmatpush2.bf16.msra.mxu0 0
    %779 = vmatprep.subr.bf16.mxu0 0
    %780 = vmatpush2.bf16.msra.mxu0 0
    %781 = vmatprep.subr.bf16.mxu0 0
    %782 = vmatpush2.bf16.msra.mxu0 0
    %783 = vmatprep.subr.bf16.mxu0 0
    %784 = vmatpush2.bf16.msra.mxu0 0
    %785 = vmatprep.subr.bf16.mxu0 0
    %786 = vmatpush2.bf16.msra.mxu0 0
    %787 = vmatprep.subr.bf16.mxu0 0
    %788 = vmatpush2.bf16.msra.mxu0 0
    %789 = vmatprep.subr.bf16.mxu0 0
    %790 = vmatpush2.bf16.msra.mxu0 0
    %791 = vmatprep.subr.bf16.mxu0 0
    %792 = vmatpush2.bf16.msra.mxu0 0
    %793 = vmatprep.mubr.bf16.mxu0 0
    %794 = vmatmul.mubr.bf16.gmra.mxu0 %v759
    %v795 = vpop.f32.mrf.mxu0
    %v796 = vadd.f32 0.0, %v795
    %v797 = vpop.f32.mrf.mxu0
    %v798 = vpop.f32.mrf.mxu0
    %v799 = vpop.f32.mrf.mxu0
    %800 = vdwg.mxu0
    %v802 = vrot.slane %v796, 4
    %v804 = vadd.f32 %v527, %v802
    %v805 = vmul.f32 %v804, %v542
    %v806 = vtanh.pop %v805
    %v807 = vmul.f32 %v542, %v806
    %v808 = vadd.f32 %v807, %v543
    %v810 = vrot.slane %v753, 4
    %811 = vrot.lane.b32.xlu0 %v810, 32
    %v812 = vpop.permute.xlu0 %811
    %v814 = vmul.f32 %v808, %v812
    %816 = vrot.lane.b32.xlu0 %v808, 64
    %v817 = vpop.permute.xlu0 %816
    %v819 = vmul.f32 %v808, %v817
    %821 = vrot.lane.b32.xlu0 %v819, 32
    %v822 = vpop.permute.xlu0 %821
    %v824 = vadd.f32 %v814, %v822
    %v825 = vtanh.pop %v824
    %827 = vrot.lane.b32.xlu0 %v825, 64
    %v828 = vpop.permute.xlu0 %827
    %v830 = vmul.f32 %v808, %v828
    %831 = vset.pattern.permute.xlu0 0
    %832 = vperm.xlu0 %831, %v110
    %v833 = vpop.permute.xlu0 %832
    %vm834 = vcmp.eq.s32.totalorder %v833, 1
    %v836 = vrot.slane %v830, 4
    %837 = vrot.lane.b32.xlu0 %v836, 32
    %v838 = vpop.permute.xlu0 %837
    %v840 = vsel %vm834, %v838, %v744
    %v842 = vrot.slane %v824, 4
    %843 = vrot.lane.b32.xlu0 %v842, 96
    %v844 = vpop.permute.xlu0 %843
    %v846 = vsel %vm834, %v844, %v753
    %v848 = vmul.f32 %v115, %v838
    %849 = vst.msk [vmem:[#allocation2 + $0x4] sm:$0x3] %vm654, %v848
    %v850 = vpack.c.bf16 %v840, %v840
    %v852 = vsel %vm290, %v850, 0
    %854 = vmatprep.subr.bf16.mxu0 0
    %855 = vmatpush1.bf16.msra.mxu0 0
    %856 = vmatprep.subr.bf16.mxu0 0
    %857 = vmatpush1.bf16.msra.mxu0 0
    %858 = vmatprep.subr.bf16.mxu0 0
    %859 = vmatpush1.bf16.msra.mxu0 0
    %860 = vmatprep.subr.bf16.mxu0 0
    %861 = vmatpush1.bf16.msra.mxu0 0
    %862 = vmatprep.subr.bf16.mxu0 0
    %863 = vmatpush1.bf16.msra.mxu0 0
    %864 = vmatprep.subr.bf16.mxu0 0
    %865 = vmatpush1.bf16.msra.mxu0 0
    %866 = vmatprep.subr.bf16.mxu0 0
    %867 = vmatpush1.bf16.msra.mxu0 %v536
    %868 = vmatprep.subr.bf16.mxu0 0
    %869 = vmatpush1.bf16.msra.mxu0 %v535
    %870 = vmatprep.subr.bf16.mxu0 0
    %871 = vmatpush2.bf16.msra.mxu0 0
    %872 = vmatprep.subr.bf16.mxu0 0
    %873 = vmatpush2.bf16.msra.mxu0 0
    %874 = vmatprep.subr.bf16.mxu0 0
    %875 = vmatpush2.bf16.msra.mxu0 0
    %876 = vmatprep.subr.bf16.mxu0 0
    %877 = vmatpush2.bf16.msra.mxu0 0
    %878 = vmatprep.subr.bf16.mxu0 0
    %879 = vmatpush2.bf16.msra.mxu0 0
    %880 = vmatprep.subr.bf16.mxu0 0
    %881 = vmatpush2.bf16.msra.mxu0 0
    %882 = vmatprep.subr.bf16.mxu0 0
    %883 = vmatpush2.bf16.msra.mxu0 0
    %884 = vmatprep.subr.bf16.mxu0 0
    %885 = vmatpush2.bf16.msra.mxu0 0
    %886 = vmatprep.mubr.bf16.mxu0 0
    %887 = vmatmul.mubr.bf16.gmra.mxu0 %v852
    %v888 = vpop.f32.mrf.mxu0
    %v889 = vadd.f32 0.0, %v888
    %v890 = vpop.f32.mrf.mxu0
    %v891 = vpop.f32.mrf.mxu0
    %v892 = vpop.f32.mrf.mxu0
    %893 = vdwg.mxu0
    %v895 = vrot.slane %v889, 2
    %v897 = vadd.f32 %v527, %v895
    %v898 = vmul.f32 %v897, %v542
    %v899 = vtanh.pop %v898
    %v900 = vmul.f32 %v542, %v899
    %v901 = vadd.f32 %v900, %v543
    %v903 = vrot.slane %v846, 2
    %904 = vrot.lane.b32.xlu0 %v903, 32
    %v905 = vpop.permute.xlu0 %904
    %v907 = vmul.f32 %v901, %v905
    %909 = vrot.lane.b32.xlu0 %v901, 64
    %v910 = vpop.permute.xlu0 %909
    %v912 = vmul.f32 %v901, %v910
    %914 = vrot.lane.b32.xlu0 %v912, 32
    %v915 = vpop.permute.xlu0 %914
    %v917 = vadd.f32 %v907, %v915
    %v918 = vtanh.pop %v917
    %920 = vrot.lane.b32.xlu0 %v918, 64
    %v921 = vpop.permute.xlu0 %920
    %v923 = vmul.f32 %v901, %v921
    %924 = vset.pattern.permute.xlu0 0
    %925 = vperm.xlu0 %924, %v120
    %v926 = vpop.permute.xlu0 %925
    %vm927 = vcmp.eq.s32.totalorder %v926, 1
    %v929 = vrot.slane %v923, 6
    %930 = vrot.lane.b32.xlu0 %v929, 32
    %v931 = vpop.permute.xlu0 %930
    %v933 = vsel %vm927, %v931, %v840
    %v935 = vrot.slane %v917, 6
    %936 = vrot.lane.b32.xlu0 %v935, 96
    %v937 = vpop.permute.xlu0 %936
    %v939 = vsel %vm927, %v937, %v846
    %v941 = vmul.f32 %v125, %v931
    %942 = vst.msk [vmem:[#allocation2 + $0x6] sm:$0x3] %vm654, %v941
    %v943 = vpack.c.bf16 %v933, %v933
    %v945 = vsel %vm290, %v943, 0
    %947 = vmatprep.subr.bf16.mxu0 0
    %948 = vmatpush1.bf16.msra.mxu0 0
    %949 = vmatprep.subr.bf16.mxu0 0
    %950 = vmatpush1.bf16.msra.mxu0 0
    %951 = vmatprep.subr.bf16.mxu0 0
    %952 = vmatpush1.bf16.msra.mxu0 0
    %953 = vmatprep.subr.bf16.mxu0 0
    %954 = vmatpush1.bf16.msra.mxu0 0
    %955 = vmatprep.subr.bf16.mxu0 0
    %956 = vmatpush1.bf16.msra.mxu0 0
    %957 = vmatprep.subr.bf16.mxu0 0
    %958 = vmatpush1.bf16.msra.mxu0 0
    %959 = vmatprep.subr.bf16.mxu0 0
    %960 = vmatpush1.bf16.msra.mxu0 %v536
    %961 = vmatprep.subr.bf16.mxu0 0
    %962 = vmatpush1.bf16.msra.mxu0 %v535
    %963 = vmatprep.subr.bf16.mxu0 0
    %964 = vmatpush2.bf16.msra.mxu0 0
    %965 = vmatprep.subr.bf16.mxu0 0
    %966 = vmatpush2.bf16.msra.mxu0 0
    %967 = vmatprep.subr.bf16.mxu0 0
    %968 = vmatpush2.bf16.msra.mxu0 0
    %969 = vmatprep.subr.bf16.mxu0 0
    %970 = vmatpush2.bf16.msra.mxu0 0
    %971 = vmatprep.subr.bf16.mxu0 0
    %972 = vmatpush2.bf16.msra.mxu0 0
    %973 = vmatprep.subr.bf16.mxu0 0
    %974 = vmatpush2.bf16.msra.mxu0 0
    %975 = vmatprep.subr.bf16.mxu0 0
    %976 = vmatpush2.bf16.msra.mxu0 0
    %977 = vmatprep.subr.bf16.mxu0 0
    %978 = vmatpush2.bf16.msra.mxu0 0
    %979 = vmatprep.mubr.bf16.mxu0 0
    %980 = vmatmul.mubr.bf16.gmra.mxu0 %v945
    %v981 = vpop.f32.mrf.mxu0
    %v982 = vadd.f32 0.0, %v981
    %v983 = vpop.f32.mrf.mxu0
    %v984 = vpop.f32.mrf.mxu0
    %v985 = vpop.f32.mrf.mxu0
    %986 = vdwg.mxu0
    %v987 = vadd.f32 %v532, %v982
    %v988 = vmul.f32 %v987, %v542
    %v989 = vtanh.pop %v988
    %v990 = vmul.f32 %v542, %v989
    %v991 = vadd.f32 %v990, %v543
    %993 = vrot.lane.b32.xlu0 %v939, 32
    %v994 = vpop.permute.xlu0 %993
    %v996 = vmul.f32 %v991, %v994
    %998 = vrot.lane.b32.xlu0 %v991, 64
    %v999 = vpop.permute.xlu0 %998
    %v1001 = vmul.f32 %v991, %v999
    %1003 = vrot.lane.b32.xlu0 %v1001, 32
    %v1004 = vpop.permute.xlu0 %1003
    %v1006 = vadd.f32 %v996, %v1004
    %v1007 = vtanh.pop %v1006
    %1009 = vrot.lane.b32.xlu0 %v1007, 64
    %v1010 = vpop.permute.xlu0 %1009
    %v1012 = vmul.f32 %v991, %v1010
    %1013 = vset.pattern.permute.xlu0 0
    %1014 = vperm.xlu0 %1013, %v130
    %v1015 = vpop.permute.xlu0 %1014
    %vm1016 = vcmp.eq.s32.totalorder %v1015, 1
    %1018 = vrot.lane.b32.xlu0 %v933, 96
    %v1019 = vpop.permute.xlu0 %1018
    %v1021 = vsel %vm1016, %v1012, %v1019
    %v1022 = vsel %vm1016, %v1006, %v994
    %v1023 = vmul.f32 %v135, %v1012
    %1025 = vrot.lane.b32.xlu0 %v1023, 32
    %v1026 = vpop.permute.xlu0 %1025
    %1028 = vst.msk [vmem:[#allocation2 + $0x8] sm:$0x3] %vm654, %v1026
    %v1029 = vpack.c.bf16 %v1021, %v1021
    %1031 = vrot.lane.b32.xlu0 %v1029, 32
    %v1032 = vpop.permute.xlu0 %1031
    %v1034 = vsel %vm290, %v1032, 0
    %1036 = vmatprep.subr.bf16.mxu0 0
    %1037 = vmatpush1.bf16.msra.mxu0 0
    %1038 = vmatprep.subr.bf16.mxu0 0
    %1039 = vmatpush1.bf16.msra.mxu0 0
    %1040 = vmatprep.subr.bf16.mxu0 0
    %1041 = vmatpush1.bf16.msra.mxu0 0
    %1042 = vmatprep.subr.bf16.mxu0 0
    %1043 = vmatpush1.bf16.msra.mxu0 0
    %1044 = vmatprep.subr.bf16.mxu0 0
    %1045 = vmatpush1.bf16.msra.mxu0 0
    %1046 = vmatprep.subr.bf16.mxu0 0
    %1047 = vmatpush1.bf16.msra.mxu0 0
    %1048 = vmatprep.subr.bf16.mxu0 0
    %1049 = vmatpush1.bf16.msra.mxu0 %v536
    %1050 = vmatprep.subr.bf16.mxu0 0
    %1051 = vmatpush1.bf16.msra.mxu0 %v535
    %1052 = vmatprep.subr.bf16.mxu0 0
    %1053 = vmatpush2.bf16.msra.mxu0 0
    %1054 = vmatprep.subr.bf16.mxu0 0
    %1055 = vmatpush2.bf16.msra.mxu0 0
    %1056 = vmatprep.subr.bf16.mxu0 0
    %1057 = vmatpush2.bf16.msra.mxu0 0
    %1058 = vmatprep.subr.bf16.mxu0 0
    %1059 = vmatpush2.bf16.msra.mxu0 0
    %1060 = vmatprep.subr.bf16.mxu0 0
    %1061 = vmatpush2.bf16.msra.mxu0 0
    %1062 = vmatprep.subr.bf16.mxu0 0
    %1063 = vmatpush2.bf16.msra.mxu0 0
    %1064 = vmatprep.subr.bf16.mxu0 0
    %1065 = vmatpush2.bf16.msra.mxu0 0
    %1066 = vmatprep.subr.bf16.mxu0 0
    %1067 = vmatpush2.bf16.msra.mxu0 0
    %1068 = vmatprep.mubr.bf16.mxu0 0
    %1069 = vmatmul.mubr.bf16.gmra.mxu0 %v1034
    %v1070 = vpop.f32.mrf.mxu0
    %v1071 = vadd.f32 0.0, %v1070
    %v1072 = vpop.f32.mrf.mxu0
    %v1073 = vpop.f32.mrf.mxu0
    %v1074 = vpop.f32.mrf.mxu0
    %1075 = vdwg.mxu0
    %v1077 = vrot.slane %v1071, 6
    %v1079 = vadd.f32 %v532, %v1077
    %v1080 = vmul.f32 %v1079, %v542
    %v1081 = vtanh.pop %v1080
    %v1082 = vmul.f32 %v542, %v1081
    %v1083 = vadd.f32 %v1082, %v543
    %v1085 = vrot.slane %v1022, 6
    %v1087 = vmul.f32 %v1083, %v1085
    %1089 = vrot.lane.b32.xlu0 %v1083, 64
    %v1090 = vpop.permute.xlu0 %1089
    %v1092 = vmul.f32 %v1083, %v1090
    %1094 = vrot.lane.b32.xlu0 %v1092, 32
    %v1095 = vpop.permute.xlu0 %1094
    %v1097 = vadd.f32 %v1087, %v1095
    %v1098 = vtanh.pop %v1097
    %1100 = vrot.lane.b32.xlu0 %v1098, 64
    %v1101 = vpop.permute.xlu0 %1100
    %v1103 = vmul.f32 %v1083, %v1101
    %1104 = vset.pattern.permute.xlu0 0
    %1105 = vperm.xlu0 %1104, %v139
    %v1106 = vpop.permute.xlu0 %1105
    %vm1107 = vcmp.eq.s32.totalorder %v1106, 1
    %v1109 = vrot.slane %v1103, 2
    %1110 = vrot.lane.b32.xlu0 %v1109, 32
    %v1111 = vpop.permute.xlu0 %1110
    %1114 = vrot.lane.b32.xlu0 %v1021, 32
    %v1115 = vpop.permute.xlu0 %1114
    %v1117 = vsel %vm1107, %v1111, %v1115
    %v1119 = vrot.slane %v1097, 2
    %1120 = vrot.lane.b32.xlu0 %v1119, 96
    %v1121 = vpop.permute.xlu0 %1120
    %1123 = vrot.lane.b32.xlu0 %v1022, 96
    %v1124 = vpop.permute.xlu0 %1123
    %v1126 = vsel %vm1107, %v1121, %v1124
    %v1128 = vmul.f32 %v144, %v1111
    %1129 = vst.msk [vmem:[#allocation2 + $0xa] sm:$0x3] %vm654, %v1128
    %v1130 = vpack.c.bf16 %v1117, %v1117
    %v1132 = vsel %vm290, %v1130, 0
    %1134 = vmatprep.subr.bf16.mxu0 0
    %1135 = vmatpush1.bf16.msra.mxu0 0
    %1136 = vmatprep.subr.bf16.mxu0 0
    %1137 = vmatpush1.bf16.msra.mxu0 0
    %1138 = vmatprep.subr.bf16.mxu0 0
    %1139 = vmatpush1.bf16.msra.mxu0 0
    %1140 = vmatprep.subr.bf16.mxu0 0
    %1141 = vmatpush1.bf16.msra.mxu0 0
    %1142 = vmatprep.subr.bf16.mxu0 0
    %1143 = vmatpush1.bf16.msra.mxu0 0
    %1144 = vmatprep.subr.bf16.mxu0 0
    %1145 = vmatpush1.bf16.msra.mxu0 0
    %1146 = vmatprep.subr.bf16.mxu0 0
    %1147 = vmatpush1.bf16.msra.mxu0 %v536
    %1148 = vmatprep.subr.bf16.mxu0 0
    %1149 = vmatpush1.bf16.msra.mxu0 %v535
    %1150 = vmatprep.subr.bf16.mxu0 0
    %1151 = vmatpush2.bf16.msra.mxu0 0
    %1152 = vmatprep.subr.bf16.mxu0 0
    %1153 = vmatpush2.bf16.msra.mxu0 0
    %1154 = vmatprep.subr.bf16.mxu0 0
    %1155 = vmatpush2.bf16.msra.mxu0 0
    %1156 = vmatprep.subr.bf16.mxu0 0
    %1157 = vmatpush2.bf16.msra.mxu0 0
    %1158 = vmatprep.subr.bf16.mxu0 0
    %1159 = vmatpush2.bf16.msra.mxu0 0
    %1160 = vmatprep.subr.bf16.mxu0 0
    %1161 = vmatpush2.bf16.msra.mxu0 0
    %1162 = vmatprep.subr.bf16.mxu0 0
    %1163 = vmatpush2.bf16.msra.mxu0 0
    %1164 = vmatprep.subr.bf16.mxu0 0
    %1165 = vmatpush2.bf16.msra.mxu0 0
    %1166 = vmatprep.mubr.bf16.mxu0 0
    %1167 = vmatmul.mubr.bf16.gmra.mxu0 %v1132
    %v1168 = vpop.f32.mrf.mxu0
    %v1169 = vadd.f32 0.0, %v1168
    %v1170 = vpop.f32.mrf.mxu0
    %v1171 = vpop.f32.mrf.mxu0
    %v1172 = vpop.f32.mrf.mxu0
    %1173 = vdwg.mxu0
    %v1175 = vrot.slane %v1169, 4
    %v1177 = vadd.f32 %v532, %v1175
    %v1178 = vmul.f32 %v1177, %v542
    %v1179 = vtanh.pop %v1178
    %v1180 = vmul.f32 %v542, %v1179
    %v1181 = vadd.f32 %v1180, %v543
    %v1183 = vrot.slane %v1126, 4
    %1184 = vrot.lane.b32.xlu0 %v1183, 32
    %v1185 = vpop.permute.xlu0 %1184
    %v1187 = vmul.f32 %v1181, %v1185
    %1189 = vrot.lane.b32.xlu0 %v1181, 64
    %v1190 = vpop.permute.xlu0 %1189
    %v1192 = vmul.f32 %v1181, %v1190
    %1194 = vrot.lane.b32.xlu0 %v1192, 32
    %v1195 = vpop.permute.xlu0 %1194
    %v1197 = vadd.f32 %v1187, %v1195
    %v1198 = vtanh.pop %v1197
    %1200 = vrot.lane.b32.xlu0 %v1198, 64
    %v1201 = vpop.permute.xlu0 %1200
    %v1203 = vmul.f32 %v1181, %v1201
    %1204 = vset.pattern.permute.xlu0 0
    %1205 = vperm.xlu0 %1204, %v149
    %v1206 = vpop.permute.xlu0 %1205
    %vm1207 = vcmp.eq.s32.totalorder %v1206, 1
    %v1209 = vrot.slane %v1203, 4
    %1210 = vrot.lane.b32.xlu0 %v1209, 32
    %v1211 = vpop.permute.xlu0 %1210
    %v1213 = vsel %vm1207, %v1211, %v1117
    %v1215 = vrot.slane %v1197, 4
    %1216 = vrot.lane.b32.xlu0 %v1215, 96
    %v1217 = vpop.permute.xlu0 %1216
    %v1219 = vsel %vm1207, %v1217, %v1126
    %v1221 = vmul.f32 %v154, %v1211
    %1222 = vst.msk [vmem:[#allocation2 + $0xc] sm:$0x3] %vm654, %v1221
    %v1223 = vpack.c.bf16 %v1213, %v1213
    %v1225 = vsel %vm290, %v1223, 0
    %1227 = vmatprep.subr.bf16.mxu0 0
    %1228 = vmatpush1.bf16.msra.mxu0 0
    %1229 = vmatprep.subr.bf16.mxu0 0
    %1230 = vmatpush1.bf16.msra.mxu0 0
    %1231 = vmatprep.subr.bf16.mxu0 0
    %1232 = vmatpush1.bf16.msra.mxu0 0
    %1233 = vmatprep.subr.bf16.mxu0 0
    %1234 = vmatpush1.bf16.msra.mxu0 0
    %1235 = vmatprep.subr.bf16.mxu0 0
    %1236 = vmatpush1.bf16.msra.mxu0 0
    %1237 = vmatprep.subr.bf16.mxu0 0
    %1238 = vmatpush1.bf16.msra.mxu0 0
    %1239 = vmatprep.subr.bf16.mxu0 0
    %1240 = vmatpush1.bf16.msra.mxu0 %v536
    %1241 = vmatprep.subr.bf16.mxu0 0
    %1242 = vmatpush1.bf16.msra.mxu0 %v535
    %1243 = vmatprep.subr.bf16.mxu0 0
    %1244 = vmatpush2.bf16.msra.mxu0 0
    %1245 = vmatprep.subr.bf16.mxu0 0
    %1246 = vmatpush2.bf16.msra.mxu0 0
    %1247 = vmatprep.subr.bf16.mxu0 0
    %1248 = vmatpush2.bf16.msra.mxu0 0
    %1249 = vmatprep.subr.bf16.mxu0 0
    %1250 = vmatpush2.bf16.msra.mxu0 0
    %1251 = vmatprep.subr.bf16.mxu0 0
    %1252 = vmatpush2.bf16.msra.mxu0 0
    %1253 = vmatprep.subr.bf16.mxu0 0
    %1254 = vmatpush2.bf16.msra.mxu0 0
    %1255 = vmatprep.subr.bf16.mxu0 0
    %1256 = vmatpush2.bf16.msra.mxu0 0
    %1257 = vmatprep.subr.bf16.mxu0 0
    %1258 = vmatpush2.bf16.msra.mxu0 0
    %1259 = vmatprep.mubr.bf16.mxu0 0
    %1260 = vmatmul.mubr.bf16.gmra.mxu0 %v1225
    %v1261 = vpop.f32.mrf.mxu0
    %v1262 = vadd.f32 0.0, %v1261
    %v1263 = vpop.f32.mrf.mxu0
    %v1264 = vpop.f32.mrf.mxu0
    %v1265 = vpop.f32.mrf.mxu0
    %1266 = vdwg.mxu0
    %v1268 = vrot.slane %v1262, 2
    %v1270 = vadd.f32 %v532, %v1268
    %v1271 = vmul.f32 %v1270, %v542
    %v1272 = vtanh.pop %v1271
    %v1273 = vmul.f32 %v542, %v1272
    %v1274 = vadd.f32 %v1273, %v543
    %v1276 = vrot.slane %v1219, 2
    %1277 = vrot.lane.b32.xlu0 %v1276, 32
    %v1278 = vpop.permute.xlu0 %1277
    %v1280 = vmul.f32 %v1274, %v1278
    %1282 = vrot.lane.b32.xlu0 %v1274, 64
    %v1283 = vpop.permute.xlu0 %1282
    %v1285 = vmul.f32 %v1274, %v1283
    %1287 = vrot.lane.b32.xlu0 %v1285, 32
    %v1288 = vpop.permute.xlu0 %1287
    %v1290 = vadd.f32 %v1280, %v1288
    %v1291 = vtanh.pop %v1290
    %1293 = vrot.lane.b32.xlu0 %v1291, 64
    %v1294 = vpop.permute.xlu0 %1293
    %v1296 = vmul.f32 %v1274, %v1294
    %v1299 = vrot.slane %v1296, 6
    %1300 = vrot.lane.b32.xlu0 %v1299, 32
    %v1301 = vpop.permute.xlu0 %1300
    %v1303 = vmul.f32 %v164, %v1301
    %1304 = vst.msk [vmem:[#allocation2 + $0xe] sm:$0x3] %vm654, %v1303
    %v1305 = vld [vmem:[#allocation2] sm:$0xff]
    %v1306 = vld [vmem:[#allocation2 + $0x8] sm:$0xff]
    %vm1307 = vcmask 269312
    %v1309 = vsel %vm1307, %v1305, 0
    %v1312 = vsel %vm1307, %v1306, 0
    %vm1314 = vcmask 1040384
    %v1316 = vsel %vm1314, %v76, 0
    %1318 = vmatprep.subr.mxu0 0.0
    %1319 = vmatpush1.msra.mxu0 0.0
    %1320 = vmatprep.subr.mxu0 0.0
    %1321 = vmatpush1.msra.mxu0 0.0
    %1322 = vmatprep.subr.mxu0 0.0
    %1323 = vmatpush1.msra.mxu0 0.0
    %1324 = vmatprep.subr.mxu0 0.0
    %1325 = vmatpush1.msra.mxu0 0.0
    %1326 = vmatprep.subr.mxu0 0.0
    %1327 = vmatpush1.msra.mxu0 0.0
    %1328 = vmatprep.subr.mxu0 0.0
    %1329 = vmatpush1.msra.mxu0 0.0
    %1330 = vmatprep.subr.mxu0 0.0
    %1331 = vmatpush1.msra.mxu0 0.0
    %1332 = vmatprep.subr.mxu0 0.0
    %1333 = vmatpush1.msra.mxu0 0.0
    %1334 = vmatprep.subr.mxu0 0.0
    %1335 = vmatpush1.msra.mxu0 0.0
    %1336 = vmatprep.subr.mxu0 0.0
    %1337 = vmatpush1.msra.mxu0 0.0
    %1338 = vmatprep.subr.mxu0 0.0
    %1339 = vmatpush1.msra.mxu0 0.0
    %1340 = vmatprep.subr.mxu0 0.0
    %1341 = vmatpush1.msra.mxu0 %v1316
    %1342 = vmatprep.subr.mxu0 0.0
    %1343 = vmatpush1.msra.mxu0 %v75
    %1344 = vmatprep.subr.mxu0 0.0
    %1345 = vmatpush1.msra.mxu0 %v74
    %1346 = vmatprep.subr.mxu0 0.0
    %1347 = vmatpush1.msra.mxu0 %v73
    %1348 = vmatprep.subr.mxu0 0.0
    %1349 = vmatpush1.msra.mxu0 %v72
    %1350 = vmatprep.subr.mxu0 0.0
    %1351 = vmatpush2.msra.mxu0 0.0
    %1352 = vmatprep.subr.mxu0 0.0
    %1353 = vmatpush2.msra.mxu0 0.0
    %1354 = vmatprep.subr.mxu0 0.0
    %1355 = vmatpush2.msra.mxu0 0.0
    %1356 = vmatprep.subr.mxu0 0.0
    %1357 = vmatpush2.msra.mxu0 0.0
    %1358 = vmatprep.subr.mxu0 0.0
    %1359 = vmatpush2.msra.mxu0 0.0
    %1360 = vmatprep.subr.mxu0 0.0
    %1361 = vmatpush2.msra.mxu0 0.0
    %1362 = vmatprep.subr.mxu0 0.0
    %1363 = vmatpush2.msra.mxu0 0.0
    %1364 = vmatprep.subr.mxu0 0.0
    %1365 = vmatpush2.msra.mxu0 0.0
    %1366 = vmatprep.subr.mxu0 0.0
    %1367 = vmatpush2.msra.mxu0 0.0
    %1368 = vmatprep.subr.mxu0 0.0
    %1369 = vmatpush2.msra.mxu0 0.0
    %1370 = vmatprep.subr.mxu0 0.0
    %1371 = vmatpush2.msra.mxu0 0.0
    %1372 = vmatprep.subr.mxu0 0.0
    %1373 = vmatpush2.msra.mxu0 0.0
    %1374 = vmatprep.subr.mxu0 0.0
    %1375 = vmatpush2.msra.mxu0 0.0
    %1376 = vmatprep.subr.mxu0 0.0
    %1377 = vmatpush2.msra.mxu0 0.0
    %1378 = vmatprep.subr.mxu0 0.0
    %1379 = vmatpush2.msra.mxu0 0.0
    %1380 = vmatprep.subr.mxu0 0.0
    %1381 = vmatpush2.msra.mxu0 0.0
    %1382 = vmatprep.mubr.f32.mxu0 0.0
    %1383 = vmatmul.mubr.f32.gmra.mxu0 %v1309
    %v1384 = vpop.f32.mrf.mxu0
    %v1385 = vadd.f32 0.0, %v1384
    %v1386 = vpop.f32.mrf.mxu0
    %1387 = vmatprep.mubr.f32.mxu0 0.0
    %1388 = vmatmul.mubr.f32.gmra.mxu0 %v1312
    %v1389 = vpop.f32.mrf.mxu0
    %v1390 = vadd.f32 0.0, %v1389
    %v1391 = vpop.f32.mrf.mxu0
    %1392 = vdwg.mxu0
    %1393 = vst.msk [vmem:[#allocation9] sm:$0xff] %vm209, %v1385
    %1394 = vst.msk [vmem:[#allocation9 + $0x8] sm:$0xff] %vm209, %v1390
    // Predicated region
    $region34: #{encoder_decoder_forward.1} parent=1 // pred_check
      _
    $region35: #{encoder_decoder_forward.1} parent=1 // pred_check_branch
      %1396 = sbr.rel (0) target = $region37
    $region36: #{encoder_decoder_forward.1} parent=1 // pred_region
      %s1398 = ssub.s32 256, 256
      %1399 = vsyncadd [#allocation5], %s1398
      %s1400 = sshll.u32 [#allocation9], 4
      %s1401 = int_to_ptr.vmem [resolvable:$true] %s1400
      %1406 = dma.vmem_to_hbm [thread:$0]  %s1401, 256, %s5, [#allocation5], 128, 128, 8
    $region37: #{encoder_decoder_forward.1} parent=1 // pred_fallthru
      _
    // Predicated region
    $region38: #{encoder_decoder_forward.1} parent=1 // pred_check
      _
    $region39: #{encoder_decoder_forward.1} parent=1 // pred_check_branch
      %1408 = sbr.rel (0) target = $region41
    $region40: #{encoder_decoder_forward.1} parent=1 // pred_region
      %1409 = dma.done [#allocation5], 256
    $region41: #{encoder_decoder_forward.1} parent=1 // pred_fallthru
      _
    %1410 = vsyncpa [#allocation4], 1
    %1411 = vsyncpa [#allocation7], 1
    %1412 = vsyncpa [#allocation5], 1

</llo_original>
